<compile_context>
chip_gen: v5e
topology: v5e:2x2
jax: 0.10.0
libtpu: 0.0.40
codegen_flags: <defaults>
</compile_context>

<pallas_src>
import jax
import jax.numpy as jnp
from jax import lax
from jax.experimental import pallas as pl
from jax.experimental.pallas import tpu as pltpu

BOUNDING_BOX_DIM = 5
NUM_ANCHOR_BOXES = 3
BN_EPS = 1e-5
LEAKY_SLOPE = 0.1


def _round_up(x, m):
    return (x + m - 1) // m * m


def _vmem_limit_bytes():
    """Cap scoped VMEM with headroom relative to the chip's physical VMEM."""
    cap = None
    try:
        cap = pltpu.get_tpu_info().vmem_capacity_bytes
    except Exception:
        cap = None
    if not cap:
        cap = 128 * 1024 * 1024  # v5e/v6e physical VMEM
    # 64 MiB on 128 MiB chips (v5e/v6e); ~48 MiB on v7x (64 MiB physical).
    return int(min(64 * 1024 * 1024, (cap * 3) // 4))


def _make_kernel(H, W, Hp, Wp, Cin, Cmid, Coutp):
    KF = 3 * Cin          # fused matmul K dimension (kw folded into channels)
    MWp = H * Wp          # matmul M dimension (H rows of the Wp-padded image)

    def kernel(x_ref, w1_ref, s1_ref, b1_ref, w2_ref, b2_ref, out_ref, xpad_ref):
        # Scratch invariant (per step, for the regions that feed valid output):
        #   xpad[r, c, kw*Cin:(kw+1)*Cin] == padded_x[r, c + kw, :]
        # where padded_x holds the image at rows/cols [1, H+1) x [1, W+1) and
        # zeros on the SAME-conv border.  Only the border strips that are read
        # but never rewritten by the interior copies are zeroed each step
        # (cheap, and independent of program_id / grid sharding).
        zrow = jnp.zeros((1, Wp, KF), jnp.bfloat16)
        zcol = jnp.zeros((H, 1, KF), jnp.bfloat16)
        xpad_ref[0:1] = zrow                                  # top pad row
        xpad_ref[H + 1:H + 2] = zrow                          # bottom pad row
        xpad_ref[1:H + 1, 0:1, :] = zcol                      # left pad (kw=0 block)
        xpad_ref[1:H + 1, W - 1:W, :] = zcol                  # right pad (kw=2 block)

        xi = x_ref[0]                                         # (H, W, Cin) bf16
        xpad_ref[1:H + 1, 1:W + 1, 0:Cin] = xi                # kw = 0
        xpad_ref[1:H + 1, 0:W, Cin:2 * Cin] = xi              # kw = 1
        xpad_ref[1:H + 1, 0:W - 1, 2 * Cin:3 * Cin] = xi[:, 1:, :]   # kw = 2

        # 3x3 conv == 3 accumulating MXU matmuls with K = 3*Cin (kw fused):
        #   acc[h*Wp + w, :] = sum_kh xpad[h + kh, w, :] @ w1f[kh]
        # Taps are 8-aligned ref-window loads; the flatten is layout-free
        # because Wp % 8 == 0.  Bare dot/add chain (MRB-friendly on v7x).
        acc = jnp.dot(xpad_ref[0:H].reshape(MWp, KF), w1_ref[0],
                      preferred_element_type=jnp.float32)
        acc = acc + jnp.dot(xpad_ref[1:H + 1].reshape(MWp, KF), w1_ref[1],
                            preferred_element_type=jnp.float32)
        acc = acc + jnp.dot(xpad_ref[2:H + 2].reshape(MWp, KF), w1_ref[2],
                            preferred_element_type=jnp.float32)

        # Folded (eval-mode) BatchNorm + LeakyReLU(0.1), in f32.
        y = acc * s1_ref[...] + b1_ref[...]
        y = jnp.where(y > 0, y, LEAKY_SLOPE * y)

        # 1x1 conv (+ bias) as one lane-dense (N = Coutp) matmul.
        out = jnp.dot(y.astype(jnp.bfloat16), w2_ref[...],
                      preferred_element_type=jnp.float32) + b2_ref[...]

        # Sublane/lane-dense store: columns [W, Wp) and lanes [Cout, Coutp)
        # contain conv-over-padding garbage -- the wrapper slices them off.
        out_ref[0] = out.reshape(H, Wp, Coutp).astype(out_ref.dtype)

    return kernel


def scale_prediction_pallas(x_nchw, params, num_classes):
    """Forward pass of ScalePrediction. x_nchw: (B, Cin, H, W) float32."""
    B, Cin, H, W = x_nchw.shape
    Cmid = 2 * Cin
    Cout = NUM_ANCHOR_BOXES * (num_classes + BOUNDING_BOX_DIM)
    Coutp = _round_up(Cout, 128)            # lane-dense output stores
    Hp = H + 2
    Wp = _round_up(W + 2, 8)                # sublane-aligned padded width
    KF = 3 * Cin

    w1 = params["w1"]            # (3, 3, Cin, Cmid)   HWIO
    gamma = params["bn_gamma"]   # (Cmid,)
    beta = params["bn_beta"]     # (Cmid,)
    mean = params["bn_mean"]     # (Cmid,)
    var = params["bn_var"]       # (Cmid,)
    w2 = params["w2"]            # (Cmid, Cout)
    b2 = params["b2"]            # (Cout,)

    # Fold eval-mode BatchNorm into a per-channel scale/bias (f32).
    s1 = gamma / jnp.sqrt(var + BN_EPS)
    b1 = beta - mean * s1

    # kw-fused 3x3 weights: (kh, kw, Cin, Cmid) -> (kh, kw*Cin + ci, Cmid),
    # matching the scratch channel layout.
    w1f = w1.reshape(3, KF, Cmid).astype(jnp.bfloat16)

    # Zero-pad the 1x1 conv weights/bias to the lane-padded Cout.
    w2p = jnp.pad(w2, ((0, 0), (0, Coutp - Cout))).astype(jnp.bfloat16)
    b2p = jnp.pad(b2, (0, Coutp - Cout)).reshape(1, Coutp)

    # Glue: NCHW -> NHWC and cast to bf16 for the MXU (zero padding is done
    # inside the kernel into VMEM scratch, no HBM padding copy).
    x_nhwc = jnp.transpose(x_nchw, (0, 2, 3, 1)).astype(jnp.bfloat16)

    single = pl.Buffered(1)      # grid-invariant inputs: no double-buffering
    kernel = _make_kernel(H, W, Hp, Wp, Cin, Cmid, Coutp)
    out_p = pl.pallas_call(
        kernel,
        out_shape=jax.ShapeDtypeStruct((B, H, Wp, Coutp), jnp.float32),
        grid_spec=pltpu.PrefetchScalarGridSpec(
            num_scalar_prefetch=0,
            grid=(B,),
            in_specs=[
                pl.BlockSpec((1, H, W, Cin), lambda b: (b, 0, 0, 0)),
                pl.BlockSpec((3, KF, Cmid), lambda b: (0, 0, 0),
                             pipeline_mode=single),
                pl.BlockSpec((1, Cmid), lambda b: (0, 0),
                             pipeline_mode=single),
                pl.BlockSpec((1, Cmid), lambda b: (0, 0),
                             pipeline_mode=single),
                pl.BlockSpec((Cmid, Coutp), lambda b: (0, 0),
                             pipeline_mode=single),
                pl.BlockSpec((1, Coutp), lambda b: (0, 0),
                             pipeline_mode=single),
            ],
            out_specs=pl.BlockSpec((1, H, Wp, Coutp), lambda b: (b, 0, 0, 0)),
            scratch_shapes=[pltpu.VMEM((Hp, Wp, KF), jnp.bfloat16)],
        ),
        compiler_params=pltpu.CompilerParams(
            dimension_semantics=("parallel",),
            vmem_limit_bytes=_vmem_limit_bytes(),
        ),
    )(
        x_nhwc,
        w1f,
        s1.reshape(1, Cmid),
        b1.reshape(1, Cmid),
        w2p,
        b2p,
    )

    # Glue: drop padded columns/lanes, split channels, match the PyTorch permute.
    out = out_p[:, :, :W, :Cout].reshape(
        B, H, W, NUM_ANCHOR_BOXES, num_classes + BOUNDING_BOX_DIM)
    return jnp.transpose(out, (0, 3, 1, 2, 4))


def scale_prediction_ref(x_nchw, params, num_classes):
    """Pure-JAX f32 reference mirroring the PyTorch module (eval-mode BN)."""
    B, Cin, H, W = x_nchw.shape
    x = jnp.transpose(x_nchw, (0, 2, 3, 1))  # NHWC
    y = lax.conv_general_dilated(
        x, params["w1"], window_strides=(1, 1), padding="SAME",
        dimension_numbers=("NHWC", "HWIO", "NHWC"),
    )
    s1 = params["bn_gamma"] / jnp.sqrt(params["bn_var"] + BN_EPS)
    b1 = params["bn_beta"] - params["bn_mean"] * s1
    y = y * s1 + b1
    y = jnp.where(y > 0, y, LEAKY_SLOPE * y)
    y = jnp.einsum("bhwc,cd->bhwd", y, params["w2"]) + params["b2"]
    out = y.reshape(B, H, W, NUM_ANCHOR_BOXES, num_classes + BOUNDING_BOX_DIM)
    return jnp.transpose(out, (0, 3, 1, 2, 4))


def init_params(key, in_channels, num_classes):
    Cin = in_channels
    Cmid = 2 * Cin
    Cout = NUM_ANCHOR_BOXES * (num_classes + BOUNDING_BOX_DIM)
    k1, k2, k3, k4, k5, k6 = jax.random.split(key, 6)
    return {
        "w1": jax.random.normal(k1, (3, 3, Cin, Cmid), jnp.float32) * 0.1,
        "bn_gamma": jax.random.uniform(k2, (Cmid,), jnp.float32, 0.5, 1.5),
        "bn_beta": jax.random.normal(k3, (Cmid,), jnp.float32) * 0.1,
        "bn_mean": jax.random.normal(k4, (Cmid,), jnp.float32) * 0.1,
        "bn_var": jax.random.uniform(k5, (Cmid,), jnp.float32, 0.5, 1.5),
        "w2": jax.random.normal(k6, (Cmid, Cout), jnp.float32) * 0.1,
        "b2": jnp.linspace(-0.5, 0.5, Cout, dtype=jnp.float32),
    }


if __name__ == "__main__":
    B, Cin, H, W = 2, 4, 16, 16
    num_classes = 3

    key = jax.random.PRNGKey(0)
    kx, kp = jax.random.split(key)
    x = jax.random.normal(kx, (B, Cin, H, W), jnp.float32)
    params = init_params(kp, Cin, num_classes)

    out = scale_prediction_pallas(x, params, num_classes)
    out = jax.block_until_ready(out)

    expected_shape = (B, NUM_ANCHOR_BOXES, H, W, num_classes + BOUNDING_BOX_DIM)
    assert out.shape == expected_shape, (out.shape, expected_shape)

    ref = jax.block_until_ready(scale_prediction_ref(x, params, num_classes))
    # bf16 MXU compute -> looser tolerance than a pure-f32 version.
    max_err = float(jnp.max(jnp.abs(out - ref)))
    assert jnp.allclose(out, ref, atol=3e-2, rtol=3e-2), max_err

    print("KERNEL_OK")
</pallas_src>

<mosaic_0001>
module attributes {stable_mosaic.version = 11 : i64} {
  func.func @kernel(%arg0: i32, %arg1: memref<1x16x16x4xbf16, #tpu.memory_space<vmem>>, %arg2: memref<3x12x8xbf16, #tpu.memory_space<vmem>>, %arg3: memref<1x8xf32, #tpu.memory_space<vmem>>, %arg4: memref<1x8xf32, #tpu.memory_space<vmem>>, %arg5: memref<8x128xbf16, #tpu.memory_space<vmem>>, %arg6: memref<1x128xf32, #tpu.memory_space<vmem>>, %arg7: memref<1x16x24x128xf32, #tpu.memory_space<vmem>>, %arg8: memref<18x24x12xbf16, #tpu.memory_space<vmem>>) attributes {dimension_semantics = [#tpu.dimension_semantics<parallel>], iteration_bounds = array<i64: 2>, scalar_prefetch = 0 : i64, scratch_operands = 1 : i64, tpu.core_type = #tpu.core_type<tc>, window_params = [{transform_indices = @transform_0, window_bounds = array<i64: 1, 16, 16, 4>}, {pipeline_mode = #tpu.pipeline_mode<synchronous>, transform_indices = @transform_1, window_bounds = array<i64: 3, 12, 8>}, {pipeline_mode = #tpu.pipeline_mode<synchronous>, transform_indices = @transform_2, window_bounds = array<i64: 1, 8>}, {pipeline_mode = #tpu.pipeline_mode<synchronous>, transform_indices = @transform_3, window_bounds = array<i64: 1, 8>}, {pipeline_mode = #tpu.pipeline_mode<synchronous>, transform_indices = @transform_4, window_bounds = array<i64: 8, 128>}, {pipeline_mode = #tpu.pipeline_mode<synchronous>, transform_indices = @transform_5, window_bounds = array<i64: 1, 128>}, {transform_indices = @transform_6, window_bounds = array<i64: 1, 16, 24, 128>}]} {
    %cst = arith.constant 0.000000e+00 : bf16
    %0 = vector.broadcast %cst : bf16 to vector<1x24x12xbf16>
    %cst_0 = arith.constant 0.000000e+00 : bf16
    %1 = vector.broadcast %cst_0 : bf16 to vector<16x1x12xbf16>
    %c0 = arith.constant 0 : index
    %c0_1 = arith.constant 0 : index
    %c0_2 = arith.constant 0 : index
    %2 = vector.load %arg8[%c0, %c0_1, %c0_2] : memref<18x24x12xbf16, #tpu.memory_space<vmem>>, vector<1x24x12xbf16>
    tpu.vector_store %arg8[%c0, %c0_1, %c0_2], %0 {strides = array<i32>} : memref<18x24x12xbf16, #tpu.memory_space<vmem>>, vector<1x24x12xbf16>,
    %c17 = arith.constant 17 : index
    %c0_3 = arith.constant 0 : index
    %c0_4 = arith.constant 0 : index
    %3 = vector.load %arg8[%c17, %c0_3, %c0_4] : memref<18x24x12xbf16, #tpu.memory_space<vmem>>, vector<1x24x12xbf16>
    tpu.vector_store %arg8[%c17, %c0_3, %c0_4], %0 {strides = array<i32>} : memref<18x24x12xbf16, #tpu.memory_space<vmem>>, vector<1x24x12xbf16>,
    %c1 = arith.constant 1 : index
    %c0_5 = arith.constant 0 : index
    %c0_6 = arith.constant 0 : index
    %4 = vector.load %arg8[%c1, %c0_5, %c0_6] : memref<18x24x12xbf16, #tpu.memory_space<vmem>>, vector<16x1x12xbf16>
    tpu.vector_store %arg8[%c1, %c0_5, %c0_6], %1 {strides = array<i32>} : memref<18x24x12xbf16, #tpu.memory_space<vmem>>, vector<16x1x12xbf16>,
    %c1_7 = arith.constant 1 : index
    %c15 = arith.constant 15 : index
    %c0_8 = arith.constant 0 : index
    %5 = vector.load %arg8[%c1_7, %c15, %c0_8] : memref<18x24x12xbf16, #tpu.memory_space<vmem>>, vector<16x1x12xbf16>
    tpu.vector_store %arg8[%c1_7, %c15, %c0_8], %1 {strides = array<i32>} : memref<18x24x12xbf16, #tpu.memory_space<vmem>>, vector<16x1x12xbf16>,
    %c0_9 = arith.constant 0 : index
    %c0_10 = arith.constant 0 : index
    %c0_11 = arith.constant 0 : index
    %c0_12 = arith.constant 0 : index
    %6 = vector.load %arg1[%c0_9, %c0_10, %c0_11, %c0_12] : memref<1x16x16x4xbf16, #tpu.memory_space<vmem>>, vector<1x16x16x4xbf16>
    %7 = vector.shape_cast %6 : vector<1x16x16x4xbf16> to vector<16x16x4xbf16>
    %c1_13 = arith.constant 1 : index
    %c1_14 = arith.constant 1 : index
    %c0_15 = arith.constant 0 : index
    %8 = vector.load %arg8[%c1_13, %c1_14, %c0_15] : memref<18x24x12xbf16, #tpu.memory_space<vmem>>, vector<16x16x4xbf16>
    tpu.vector_store %arg8[%c1_13, %c1_14, %c0_15], %7 {strides = array<i32>} : memref<18x24x12xbf16, #tpu.memory_space<vmem>>, vector<16x16x4xbf16>,
    %c1_16 = arith.constant 1 : index
    %c0_17 = arith.constant 0 : index
    %c4 = arith.constant 4 : index
    %9 = vector.load %arg8[%c1_16, %c0_17, %c4] : memref<18x24x12xbf16, #tpu.memory_space<vmem>>, vector<16x16x4xbf16>
    tpu.vector_store %arg8[%c1_16, %c0_17, %c4], %7 {strides = array<i32>} : memref<18x24x12xbf16, #tpu.memory_space<vmem>>, vector<16x16x4xbf16>,
    %10 = vector.extract_strided_slice %7 {offsets = [0, 1, 0], sizes = [16, 15, 4], strides = [1, 1, 1]} : vector<16x16x4xbf16> to vector<16x15x4xbf16>
    %c1_18 = arith.constant 1 : index
    %c0_19 = arith.constant 0 : index
    %c8 = arith.constant 8 : index
    %11 = vector.load %arg8[%c1_18, %c0_19, %c8] : memref<18x24x12xbf16, #tpu.memory_space<vmem>>, vector<16x15x4xbf16>
    tpu.vector_store %arg8[%c1_18, %c0_19, %c8], %10 {strides = array<i32>} : memref<18x24x12xbf16, #tpu.memory_space<vmem>>, vector<16x15x4xbf16>,
    %c0_20 = arith.constant 0 : index
    %c0_21 = arith.constant 0 : index
    %c0_22 = arith.constant 0 : index
    %12 = vector.load %arg8[%c0_20, %c0_21, %c0_22] : memref<18x24x12xbf16, #tpu.memory_space<vmem>>, vector<16x24x12xbf16>
    %13 = vector.shape_cast %12 : vector<16x24x12xbf16> to vector<384x12xbf16>
    %c0_23 = arith.constant 0 : index
    %c0_24 = arith.constant 0 : index
    %c0_25 = arith.constant 0 : index
    %14 = vector.load %arg2[%c0_23, %c0_24, %c0_25] : memref<3x12x8xbf16, #tpu.memory_space<vmem>>, vector<1x12x8xbf16>
    %15 = vector.shape_cast %14 : vector<1x12x8xbf16> to vector<12x8xbf16>
    %cst_26 = arith.constant dense<0.000000e+00> : vector<384x8xf32>
    %16 = tpu.matmul %13, %15, %cst_26 {dimension_numbers = #tpu.dot_dimension_numbers<[1], [0], [0], [1], [0, 0, 1, 1], [], []>} : vector<384x12xbf16>, vector<12x8xbf16>, vector<384x8xf32> -> vector<384x8xf32>
    %c1_27 = arith.constant 1 : index
    %c0_28 = arith.constant 0 : index
    %c0_29 = arith.constant 0 : index
    %17 = vector.load %arg8[%c1_27, %c0_28, %c0_29] : memref<18x24x12xbf16, #tpu.memory_space<vmem>>, vector<16x24x12xbf16>
    %18 = vector.shape_cast %17 : vector<16x24x12xbf16> to vector<384x12xbf16>
    %c1_30 = arith.constant 1 : index
    %c0_31 = arith.constant 0 : index
    %c0_32 = arith.constant 0 : index
    %19 = vector.load %arg2[%c1_30, %c0_31, %c0_32] : memref<3x12x8xbf16, #tpu.memory_space<vmem>>, vector<1x12x8xbf16>
    %20 = vector.shape_cast %19 : vector<1x12x8xbf16> to vector<12x8xbf16>
    %cst_33 = arith.constant dense<0.000000e+00> : vector<384x8xf32>
    %21 = tpu.matmul %18, %20, %cst_33 {dimension_numbers = #tpu.dot_dimension_numbers<[1], [0], [0], [1], [0, 0, 1, 1], [], []>} : vector<384x12xbf16>, vector<12x8xbf16>, vector<384x8xf32> -> vector<384x8xf32>
    %22 = arith.addf %16, %21 : vector<384x8xf32>
    %c2 = arith.constant 2 : index
    %c0_34 = arith.constant 0 : index
    %c0_35 = arith.constant 0 : index
    %23 = vector.load %arg8[%c2, %c0_34, %c0_35] : memref<18x24x12xbf16, #tpu.memory_space<vmem>>, vector<16x24x12xbf16>
    %24 = vector.shape_cast %23 : vector<16x24x12xbf16> to vector<384x12xbf16>
    %c2_36 = arith.constant 2 : index
    %c0_37 = arith.constant 0 : index
    %c0_38 = arith.constant 0 : index
    %25 = vector.load %arg2[%c2_36, %c0_37, %c0_38] : memref<3x12x8xbf16, #tpu.memory_space<vmem>>, vector<1x12x8xbf16>
    %26 = vector.shape_cast %25 : vector<1x12x8xbf16> to vector<12x8xbf16>
    %cst_39 = arith.constant dense<0.000000e+00> : vector<384x8xf32>
    %27 = tpu.matmul %24, %26, %cst_39 {dimension_numbers = #tpu.dot_dimension_numbers<[1], [0], [0], [1], [0, 0, 1, 1], [], []>} : vector<384x12xbf16>, vector<12x8xbf16>, vector<384x8xf32> -> vector<384x8xf32>
    %28 = arith.addf %22, %27 : vector<384x8xf32>
    %c0_40 = arith.constant 0 : index
    %c0_41 = arith.constant 0 : index
    %29 = vector.load %arg3[%c0_40, %c0_41] : memref<1x8xf32, #tpu.memory_space<vmem>>, vector<1x8xf32>
    %30 = vector.broadcast %29 : vector<1x8xf32> to vector<384x8xf32>
    %31 = arith.mulf %28, %30 : vector<384x8xf32>
    %c0_42 = arith.constant 0 : index
    %c0_43 = arith.constant 0 : index
    %32 = vector.load %arg4[%c0_42, %c0_43] : memref<1x8xf32, #tpu.memory_space<vmem>>, vector<1x8xf32>
    %33 = vector.broadcast %32 : vector<1x8xf32> to vector<384x8xf32>
    %34 = arith.addf %31, %33 : vector<384x8xf32>
    %cst_44 = arith.constant 0.000000e+00 : f32
    %35 = vector.broadcast %cst_44 : f32 to vector<384x8xf32>
    %36 = arith.cmpf ogt, %34, %35 : vector<384x8xf32>
    %cst_45 = arith.constant 1.000000e-01 : f32
    %37 = vector.broadcast %cst_45 : f32 to vector<384x8xf32>
    %38 = arith.mulf %37, %34 : vector<384x8xf32>
    %39 = arith.select %36, %34, %38 : vector<384x8xi1>, vector<384x8xf32>
    %40 = arith.truncf %39 : vector<384x8xf32> to vector<384x8xbf16>
    %c0_46 = arith.constant 0 : index
    %c0_47 = arith.constant 0 : index
    %41 = vector.load %arg5[%c0_46, %c0_47] : memref<8x128xbf16, #tpu.memory_space<vmem>>, vector<8x128xbf16>
    %cst_48 = arith.constant dense<0.000000e+00> : vector<384x128xf32>
    %42 = tpu.matmul %40, %41, %cst_48 {dimension_numbers = #tpu.dot_dimension_numbers<[1], [0], [0], [1], [0, 0, 1, 1], [], []>} : vector<384x8xbf16>, vector<8x128xbf16>, vector<384x128xf32> -> vector<384x128xf32>
    %c0_49 = arith.constant 0 : index
    %c0_50 = arith.constant 0 : index
    %43 = vector.load %arg6[%c0_49, %c0_50] : memref<1x128xf32, #tpu.memory_space<vmem>>, vector<1x128xf32>
    %44 = vector.broadcast %43 : vector<1x128xf32> to vector<384x128xf32>
    %45 = arith.addf %42, %44 : vector<384x128xf32>
    %46 = vector.shape_cast %45 : vector<384x128xf32> to vector<16x24x128xf32>
    %c0_51 = arith.constant 0 : index
    %c0_52 = arith.constant 0 : index
    %c0_53 = arith.constant 0 : index
    %c0_54 = arith.constant 0 : index
    %47 = vector.load %arg7[%c0_51, %c0_52, %c0_53, %c0_54] : memref<1x16x24x128xf32, #tpu.memory_space<vmem>>, vector<1x16x24x128xf32>
    %48 = vector.shape_cast %47 : vector<1x16x24x128xf32> to vector<16x24x128xf32>
    %49 = vector.shape_cast %46 : vector<16x24x128xf32> to vector<1x16x24x128xf32>
    tpu.vector_store %arg7[%c0_51, %c0_52, %c0_53, %c0_54], %49 {strides = array<i32>} : memref<1x16x24x128xf32, #tpu.memory_space<vmem>>, vector<1x16x24x128xf32>,
    return
  }
  func.func @transform_0(%arg0: i32) -> (i32, i32, i32, i32) {
    %c0_i32 = arith.constant 0 : i32
    %c0_i32_0 = arith.constant 0 : i32
    %c0_i32_1 = arith.constant 0 : i32
    %c0_i32_2 = arith.constant 0 : i32
    return %arg0, %c0_i32, %c0_i32_0, %c0_i32_1 : i32, i32, i32, i32
  }
  func.func @transform_1(%arg0: i32) -> (i32, i32, i32) {
    %c0_i32 = arith.constant 0 : i32
    %c0_i32_0 = arith.constant 0 : i32
    %c0_i32_1 = arith.constant 0 : i32
    %c0_i32_2 = arith.constant 0 : i32
    return %c0_i32, %c0_i32_0, %c0_i32_1 : i32, i32, i32
  }
  func.func @transform_2(%arg0: i32) -> (i32, i32) {
    %c0_i32 = arith.constant 0 : i32
    %c0_i32_0 = arith.constant 0 : i32
    %c0_i32_1 = arith.constant 0 : i32
    return %c0_i32, %c0_i32_0 : i32, i32
  }
  func.func @transform_3(%arg0: i32) -> (i32, i32) {
    %c0_i32 = arith.constant 0 : i32
    %c0_i32_0 = arith.constant 0 : i32
    %c0_i32_1 = arith.constant 0 : i32
    return %c0_i32, %c0_i32_0 : i32, i32
  }
  func.func @transform_4(%arg0: i32) -> (i32, i32) {
    %c0_i32 = arith.constant 0 : i32
    %c0_i32_0 = arith.constant 0 : i32
    %c0_i32_1 = arith.constant 0 : i32
    return %c0_i32, %c0_i32_0 : i32, i32
  }
  func.func @transform_5(%arg0: i32) -> (i32, i32) {
    %c0_i32 = arith.constant 0 : i32
    %c0_i32_0 = arith.constant 0 : i32
    %c0_i32_1 = arith.constant 0 : i32
    return %c0_i32, %c0_i32_0 : i32, i32
  }
  func.func @transform_6(%arg0: i32) -> (i32, i32, i32, i32) {
    %c0_i32 = arith.constant 0 : i32
    %c0_i32_0 = arith.constant 0 : i32
    %c0_i32_1 = arith.constant 0 : i32
    %c0_i32_2 = arith.constant 0 : i32
    return %arg0, %c0_i32, %c0_i32_0, %c0_i32_1 : i32, i32, i32, i32
  }
}

</mosaic_0001>

<llo_original>
// kernel: tpu_custom_call.1
$region0: #{tpu_custom_call.1}
  #allocation0 [shape = 'u32[]', space=smem, size = 0x4, offset = 0x4, fixed_abs, tag = 'smem constant byte address 0x4 - core index']
  #allocation1 [shape = 'u32[72,128]{1,0:T(1,128)}', space=vmem, size = 0x9000, scoped, tag = 'internal scratch']
  #allocation2 [shape = 'bf16[18,24,12]{2,1,0:T(8,128)(2,1)}', space=vmem, size = 0x1b000, scoped, tag = 'scratch operand']
  %s0 = inlined_call_operand.vmem [shape: bf16[2,16,16,4], index: 0, kind: input, shape index: {}]
  %s1 = inlined_call_operand.vmem [shape: bf16[3,12,8], index: 1, kind: input, shape index: {}]
  %s2 = inlined_call_operand.vmem [shape: f32[1,8], index: 2, kind: input, shape index: {}]
  %s3 = inlined_call_operand.vmem [shape: f32[1,8], index: 3, kind: input, shape index: {}]
  %s4 = inlined_call_operand.vmem [shape: bf16[8,128], index: 4, kind: input, shape index: {}]
  %s5 = inlined_call_operand.vmem [shape: f32[1,128], index: 5, kind: input, shape index: {}]
  %s6 = inlined_call_operand.hbm [shape: f32[2,16,24,128], index: 6, kind: output, shape index: {}]
  %s7 = sld [smem:[#allocation0]]
  $region57: #{tpu_custom_call.1} parent=0
    _
  %s9 = ssub.s32 1, %s7
  %s10 = scalar_select 0, %s9, %s7
  $region1: #{tpu_custom_call.1} parent=0
    #allocation3 [shape = 'u8[393216]{0}', space=vmem, size = 0x60000, scoped, tag = 'output window, operand 0']
    #allocation4 [shape = 's32[2]{0}', space=sflag, size = 0x8, scoped, tag = 'scoped memory for tpu_custom_call.1']
    %11 = vsyncpa [#allocation4], 0
    %s12 = scalar_lea.sflag [#allocation4], 1
    %13 = vsyncpa %s12, 0
    loop: start=0, step=1, limit=4
    $region2: #{tpu_custom_call.1} parent=1 // loop_pre_header
      _
    $region3: #{tpu_custom_call.1} parent=1 // loop_header
      %s15 = sphi 0, %s19
      %p16 = scmp.ge.s32.totalorder %s15, 4
      %s25 = sphi 0, %s27
      %s28 = sphi 0, %s25
      %s29 = sphi 0, %s28
      %s45 = sphi 0, %s29
      %s49 = sphi 0, %s49
      %s51 = sphi 0, %s49
      %s52 = sphi 0, %s51
      %s66 = sphi 0, %s52
      %s70 = sphi 0, %s70
      %s72 = sphi 0, %s70
      %s73 = sphi 0, %s72
      %s87 = sphi 0, %s73
      %s91 = sphi 0, %s91
      %s93 = sphi 0, %s91
      %s94 = sphi 0, %s93
      %s108 = sphi 0, %s94
      %s112 = sphi 0, %s112
      %s114 = sphi 0, %s112
      %s115 = sphi 0, %s114
      %s129 = sphi 0, %s115
      %s133 = sphi 0, %s133
      %s135 = sphi 0, %s133
      %s136 = sphi 0, %s135
      %s150 = sphi 0, %s136
      %s156 = sphi 0, %s158
      %s159 = sphi 0, %s156
      %s160 = sphi 0, %s159
      %s176 = sphi 0, %s160
    $region4: #{tpu_custom_call.1} parent=1 // loop_header_branch
      %18 = sbr.rel (%p16) target = $region8
    $region5: #{tpu_custom_call.1} parent=1 // loop_body
      %s20 = ssub.s32 %s15, 1
      %s21 = ssub.s32 %s15, 2
      %s22 = sadd.s32 %s15, 1
      %s23 = ssub.s32 %s15, %s22
      %p24 = scmp.eq.s32.totalorder %s23, 0
      %s26 = sadd.s32 %s25, 1
      %s27 = scalar_select %p24, %s25, %s26
      %p30 = pneg %p24
      %p31 = scmp.eq.s32.totalorder %s15, 1
      %p32 = por %p30, %p31
      %p33 = scmp.ne.s32.totalorder %s25, %s28
      %p34 = scmp.eq.s32.totalorder %s15, 0
      %p35 = por %p33, %p34
      %p36 = scmp.ne.s32.totalorder %s25, %s28
      %p37 = scmp.eq.s32.totalorder %s20, 1
      %p38 = por %p36, %p37
      %p39 = scmp.ne.s32.totalorder %s28, %s29
      %p40 = scmp.eq.s32.totalorder %s20, 0
      %p41 = por %p39, %p40
      %p42 = scmp.ne.s32.totalorder %s28, %s29
      %p43 = scmp.eq.s32.totalorder %s21, 1
      %p44 = por %p42, %p43
      %p46 = scmp.ne.s32.totalorder %s29, %s45
      %p47 = scmp.eq.s32.totalorder %s21, 0
      %p48 = por %p46, %p47
      %s50 = sadd.s32 %s49, 1
      %p53 = scmp.eq.s32.totalorder %s15, 1
      %p54 = scmp.ne.s32.totalorder %s49, %s51
      %p55 = scmp.eq.s32.totalorder %s15, 0
      %p56 = por %p54, %p55
      %p57 = scmp.ne.s32.totalorder %s49, %s51
      %p58 = scmp.eq.s32.totalorder %s20, 1
      %p59 = por %p57, %p58
      %p60 = scmp.ne.s32.totalorder %s51, %s52
      %p61 = scmp.eq.s32.totalorder %s20, 0
      %p62 = por %p60, %p61
      %p63 = scmp.ne.s32.totalorder %s51, %s52
      %p64 = scmp.eq.s32.totalorder %s21, 1
      %p65 = por %p63, %p64
      %p67 = scmp.ne.s32.totalorder %s52, %s66
      %p68 = scmp.eq.s32.totalorder %s21, 0
      %p69 = por %p67, %p68
      %s71 = sadd.s32 %s70, 1
      %p74 = scmp.eq.s32.totalorder %s15, 1
      %p75 = scmp.ne.s32.totalorder %s70, %s72
      %p76 = scmp.eq.s32.totalorder %s15, 0
      %p77 = por %p75, %p76
      %p78 = scmp.ne.s32.totalorder %s70, %s72
      %p79 = scmp.eq.s32.totalorder %s20, 1
      %p80 = por %p78, %p79
      %p81 = scmp.ne.s32.totalorder %s72, %s73
      %p82 = scmp.eq.s32.totalorder %s20, 0
      %p83 = por %p81, %p82
      %p84 = scmp.ne.s32.totalorder %s72, %s73
      %p85 = scmp.eq.s32.totalorder %s21, 1
      %p86 = por %p84, %p85
      %p88 = scmp.ne.s32.totalorder %s73, %s87
      %p89 = scmp.eq.s32.totalorder %s21, 0
      %p90 = por %p88, %p89
      %s92 = sadd.s32 %s91, 1
      %p95 = scmp.eq.s32.totalorder %s15, 1
      %p96 = scmp.ne.s32.totalorder %s91, %s93
      %p97 = scmp.eq.s32.totalorder %s15, 0
      %p98 = por %p96, %p97
      %p99 = scmp.ne.s32.totalorder %s91, %s93
      %p100 = scmp.eq.s32.totalorder %s20, 1
      %p101 = por %p99, %p100
      %p102 = scmp.ne.s32.totalorder %s93, %s94
      %p103 = scmp.eq.s32.totalorder %s20, 0
      %p104 = por %p102, %p103
      %p105 = scmp.ne.s32.totalorder %s93, %s94
      %p106 = scmp.eq.s32.totalorder %s21, 1
      %p107 = por %p105, %p106
      %p109 = scmp.ne.s32.totalorder %s94, %s108
      %p110 = scmp.eq.s32.totalorder %s21, 0
      %p111 = por %p109, %p110
      %s113 = sadd.s32 %s112, 1
      %p116 = scmp.eq.s32.totalorder %s15, 1
      %p117 = scmp.ne.s32.totalorder %s112, %s114
      %p118 = scmp.eq.s32.totalorder %s15, 0
      %p119 = por %p117, %p118
      %p120 = scmp.ne.s32.totalorder %s112, %s114
      %p121 = scmp.eq.s32.totalorder %s20, 1
      %p122 = por %p120, %p121
      %p123 = scmp.ne.s32.totalorder %s114, %s115
      %p124 = scmp.eq.s32.totalorder %s20, 0
      %p125 = por %p123, %p124
      %p126 = scmp.ne.s32.totalorder %s114, %s115
      %p127 = scmp.eq.s32.totalorder %s21, 1
      %p128 = por %p126, %p127
      %p130 = scmp.ne.s32.totalorder %s115, %s129
      %p131 = scmp.eq.s32.totalorder %s21, 0
      %p132 = por %p130, %p131
      %s134 = sadd.s32 %s133, 1
      %p137 = scmp.eq.s32.totalorder %s15, 1
      %p138 = scmp.ne.s32.totalorder %s133, %s135
      %p139 = scmp.eq.s32.totalorder %s15, 0
      %p140 = por %p138, %p139
      %p141 = scmp.ne.s32.totalorder %s133, %s135
      %p142 = scmp.eq.s32.totalorder %s20, 1
      %p143 = por %p141, %p142
      %p144 = scmp.ne.s32.totalorder %s135, %s136
      %p145 = scmp.eq.s32.totalorder %s20, 0
      %p146 = por %p144, %p145
      %p147 = scmp.ne.s32.totalorder %s135, %s136
      %p148 = scmp.eq.s32.totalorder %s21, 1
      %p149 = por %p147, %p148
      %p151 = scmp.ne.s32.totalorder %s136, %s150
      %p152 = scmp.eq.s32.totalorder %s21, 0
      %p153 = por %p151, %p152
      %s154 = ssub.s32 %s15, %s22
      %p155 = scmp.eq.s32.totalorder %s154, 0
      %s157 = sadd.s32 %s156, 1
      %s158 = scalar_select %p155, %s156, %s157
      %p161 = pneg %p155
      %p162 = scmp.eq.s32.totalorder %s15, 1
      %p163 = por %p161, %p162
      %p164 = scmp.ne.s32.totalorder %s156, %s159
      %p165 = scmp.eq.s32.totalorder %s15, 0
      %p166 = por %p164, %p165
      %p167 = scmp.ne.s32.totalorder %s156, %s159
      %p168 = scmp.eq.s32.totalorder %s20, 1
      %p169 = por %p167, %p168
      %p170 = scmp.ne.s32.totalorder %s159, %s160
      %p171 = scmp.eq.s32.totalorder %s20, 0
      %p172 = por %p170, %p171
      %p173 = scmp.ne.s32.totalorder %s159, %s160
      %p174 = scmp.eq.s32.totalorder %s21, 1
      %p175 = por %p173, %p174
      %p177 = scmp.ne.s32.totalorder %s160, %s176
      %p178 = scmp.eq.s32.totalorder %s21, 0
      %p179 = por %p177, %p178
      %p180 = scmp.le.s32.totalorder 1, %s15
      %p181 = scmp.lt.s32.totalorder %s15, 3
      %p182 = pnand %p180, %p181
      %p183 = pneg %p182
      // Predicated region
      $region9: #{tpu_custom_call.1} parent=5 // pred_check
        _
      $region10: #{tpu_custom_call.1} parent=5 // pred_check_branch
        %185 = sbr.rel (%p182) target = $region12
      $region11: #{tpu_custom_call.1} parent=5 // pred_region
        %s186 = ssub.s32 %s15, 1
        // Predicated region
        $region13: #{tpu_custom_call.1} parent=11 // pred_check
          %p187 = pneg %p62
        $region14: #{tpu_custom_call.1} parent=11 // pred_check_branch
          %189 = sbr.rel (%p187) target = $region16
        $region15: #{tpu_custom_call.1} parent=11 // pred_region
          _
        $region16: #{tpu_custom_call.1} parent=11 // pred_fallthru
          _
        // Predicated region
        $region17: #{tpu_custom_call.1} parent=11 // pred_check
          %p190 = pneg %p83
        $region18: #{tpu_custom_call.1} parent=11 // pred_check_branch
          %192 = sbr.rel (%p190) target = $region20
        $region19: #{tpu_custom_call.1} parent=11 // pred_region
          _
        $region20: #{tpu_custom_call.1} parent=11 // pred_fallthru
          _
        // Predicated region
        $region21: #{tpu_custom_call.1} parent=11 // pred_check
          %p193 = pneg %p104
        $region22: #{tpu_custom_call.1} parent=11 // pred_check_branch
          %195 = sbr.rel (%p193) target = $region24
        $region23: #{tpu_custom_call.1} parent=11 // pred_region
          _
        $region24: #{tpu_custom_call.1} parent=11 // pred_fallthru
          _
        // Predicated region
        $region25: #{tpu_custom_call.1} parent=11 // pred_check
          %p196 = pneg %p125
        $region26: #{tpu_custom_call.1} parent=11 // pred_check_branch
          %198 = sbr.rel (%p196) target = $region28
        $region27: #{tpu_custom_call.1} parent=11 // pred_region
          _
        $region28: #{tpu_custom_call.1} parent=11 // pred_fallthru
          _
        // Predicated region
        $region29: #{tpu_custom_call.1} parent=11 // pred_check
          %p199 = pneg %p146
        $region30: #{tpu_custom_call.1} parent=11 // pred_check_branch
          %201 = sbr.rel (%p199) target = $region32
        $region31: #{tpu_custom_call.1} parent=11 // pred_region
          _
        $region32: #{tpu_custom_call.1} parent=11 // pred_fallthru
          _
      $region12: #{tpu_custom_call.1} parent=5 // pred_fallthru
        _
      %p202 = scmp.lt.s32.totalorder %s15, 2
      // Predicated region
      $region33: #{tpu_custom_call.1} parent=5 // pred_check
        %p203 = pneg %p202
      $region34: #{tpu_custom_call.1} parent=5 // pred_check_branch
        %205 = sbr.rel (%p203) target = $region36
      $region35: #{tpu_custom_call.1} parent=5 // pred_region
        // Predicated region
        $region37: #{tpu_custom_call.1} parent=35 // pred_check
          %p206 = pneg %p35
        $region38: #{tpu_custom_call.1} parent=35 // pred_check_branch
          %208 = sbr.rel (%p206) target = $region40
        $region39: #{tpu_custom_call.1} parent=35 // pred_region
          %p209 = scmp.lt.s32.totalorder %s15, 1
          %s210 = scalar_select %p209, %s15, 1
          %s211 = smul.addr %s210, 32
          %s212 = smul.addr %s211, 4
          %s213 = scalar_lea.vmem %s0, %s212
        $region40: #{tpu_custom_call.1} parent=35 // pred_fallthru
          _
      $region36: #{tpu_custom_call.1} parent=5 // pred_fallthru
        _
      %p214 = scmp.le.s32.totalorder 1, %s15
      %p215 = scmp.lt.s32.totalorder %s15, 3
      %p216 = pnand %p214, %p215
      %p217 = pneg %p216
      // Predicated region
      $region41: #{tpu_custom_call.1} parent=5 // pred_check
        _
      $region42: #{tpu_custom_call.1} parent=5 // pred_check_branch
        %219 = sbr.rel (%p216) target = $region44
      $region43: #{tpu_custom_call.1} parent=5 // pred_region
        %s220 = ssub.s32 %s15, 1
        %p221 = scmp.lt.s32.totalorder %s20, 1
        %s222 = scalar_select %p221, %s20, 1
        %s223 = smul.addr %s222, 32
        %s224 = smul.addr %s223, 4
        %s225 = scalar_lea.vmem %s0, %s224
        %p226 = pneg %p41
        %p227 = pneg %p38
        %p228 = pneg %p62
        %p229 = pneg %p59
        %p230 = pneg %p83
        %p231 = pneg %p80
        %p232 = pneg %p104
        %p233 = pneg %p101
        %p234 = pneg %p125
        %p235 = pneg %p122
        %p236 = pneg %p146
        %p237 = pneg %p143
        %p238 = pneg %p172
        %p239 = pneg %p169
        %s240 = sand.u32 %s159, 1
        %s241 = scalar_lea.sflag [#allocation4], %s240
        %s242 = sand.u32 %s159, 1
        %s243 = smul.addr %s242, 384
        %s244 = scalar_lea.vmem [#allocation3], %s243
        %p245 = scmp.lt.s32.totalorder %s20, 1
        %s246 = scalar_select %p245, %s20, 1
        %s247 = smul.addr %s246, 32
        %s248 = smul.addr %s247, 4
        %s249 = scalar_lea.vmem %s0, %s248
        %vm251 = vcmask 93184
        %252 = vst.msk [vmem:[#allocation2] sm:$0xf] %vm251, 0
        %253 = vst.msk [vmem:[#allocation2 + $0x4] sm:$0xf] %vm251, 0
        %254 = vst.msk [vmem:[#allocation2 + $0x8] sm:$0xf] %vm251, 0
        %s255 = scalar_lea.vmem [#allocation2], 204
        %256 = vst.msk [vmem:[%s255] sm:$0xf] %vm251, 0
        %257 = vst.msk [vmem:[%s255 + $0x4] sm:$0xf] %vm251, 0
        %258 = vst.msk [vmem:[%s255 + $0x8] sm:$0xf] %vm251, 0
        %s259 = scalar_lea.vmem [#allocation2], 12
        %vm260 = vcmask 90112
        %vm261 = vsmask.f32 256
        %vm262 = vmand %vm260, %vm261
        %v263 = vld [vmem:[%s259] sm:$0x1]
        %v264 = vsel %vm262, 0, %v263
        %265 = vst [vmem:[%s259] sm:$0x1] %v264
        %v266 = vld [vmem:[%s259 + $0xc] sm:$0x1]
        %v267 = vsel %vm262, 0, %v266
        %268 = vst [vmem:[%s259 + $0xc] sm:$0x1] %v267
        %v269 = vld [vmem:[%s259 + $0x18] sm:$0x1]
        %v270 = vsel %vm262, 0, %v269
        %271 = vst [vmem:[%s259 + $0x18] sm:$0x1] %v270
        %v272 = vld [vmem:[%s259 + $0x24] sm:$0x1]
        %v273 = vsel %vm262, 0, %v272
        %274 = vst [vmem:[%s259 + $0x24] sm:$0x1] %v273
        %v275 = vld [vmem:[%s259 + $0x30] sm:$0x1]
        %v276 = vsel %vm262, 0, %v275
        %277 = vst [vmem:[%s259 + $0x30] sm:$0x1] %v276
        %v278 = vld [vmem:[%s259 + $0x3c] sm:$0x1]
        %v279 = vsel %vm262, 0, %v278
        %280 = vst [vmem:[%s259 + $0x3c] sm:$0x1] %v279
        %v281 = vld [vmem:[%s259 + $0x48] sm:$0x1]
        %v282 = vsel %vm262, 0, %v281
        %283 = vst [vmem:[%s259 + $0x48] sm:$0x1] %v282
        %v284 = vld [vmem:[%s259 + $0x54] sm:$0x1]
        %v285 = vsel %vm262, 0, %v284
        %286 = vst [vmem:[%s259 + $0x54] sm:$0x1] %v285
        %v287 = vld [vmem:[%s259 + $0x60] sm:$0x1]
        %v288 = vsel %vm262, 0, %v287
        %289 = vst [vmem:[%s259 + $0x60] sm:$0x1] %v288
        %v290 = vld [vmem:[%s259 + $0x6c] sm:$0x1]
        %v291 = vsel %vm262, 0, %v290
        %292 = vst [vmem:[%s259 + $0x6c] sm:$0x1] %v291
        %v293 = vld [vmem:[%s259 + $0x78] sm:$0x1]
        %v294 = vsel %vm262, 0, %v293
        %295 = vst [vmem:[%s259 + $0x78] sm:$0x1] %v294
        %v296 = vld [vmem:[%s259 + $0x84] sm:$0x1]
        %v297 = vsel %vm262, 0, %v296
        %298 = vst [vmem:[%s259 + $0x84] sm:$0x1] %v297
        %v299 = vld [vmem:[%s259 + $0x90] sm:$0x1]
        %v300 = vsel %vm262, 0, %v299
        %301 = vst [vmem:[%s259 + $0x90] sm:$0x1] %v300
        %v302 = vld [vmem:[%s259 + $0x9c] sm:$0x1]
        %v303 = vsel %vm262, 0, %v302
        %304 = vst [vmem:[%s259 + $0x9c] sm:$0x1] %v303
        %v305 = vld [vmem:[%s259 + $0xa8] sm:$0x1]
        %v306 = vsel %vm262, 0, %v305
        %307 = vst [vmem:[%s259 + $0xa8] sm:$0x1] %v306
        %v308 = vld [vmem:[%s259 + $0xb4] sm:$0x1]
        %v309 = vsel %vm262, 0, %v308
        %310 = vst [vmem:[%s259 + $0xb4] sm:$0x1] %v309
        %vm311 = vcmask 93187
        %vm312 = vsmask.f32 7950
        %vm313 = vmand %vm311, %vm312
        %v314 = vld [vmem:[%s259 + $0x4] sm:$0x8]
        %v315 = vsel %vm313, 0, %v314
        %316 = vst [vmem:[%s259 + $0x4] sm:$0x8] %v315
        %v317 = vld [vmem:[%s259 + $0x10] sm:$0x8]
        %v318 = vsel %vm313, 0, %v317
        %319 = vst [vmem:[%s259 + $0x10] sm:$0x8] %v318
        %v320 = vld [vmem:[%s259 + $0x1c] sm:$0x8]
        %v321 = vsel %vm313, 0, %v320
        %322 = vst [vmem:[%s259 + $0x1c] sm:$0x8] %v321
        %v323 = vld [vmem:[%s259 + $0x28] sm:$0x8]
        %v324 = vsel %vm313, 0, %v323
        %325 = vst [vmem:[%s259 + $0x28] sm:$0x8] %v324
        %v326 = vld [vmem:[%s259 + $0x34] sm:$0x8]
        %v327 = vsel %vm313, 0, %v326
        %328 = vst [vmem:[%s259 + $0x34] sm:$0x8] %v327
        %v329 = vld [vmem:[%s259 + $0x40] sm:$0x8]
        %v330 = vsel %vm313, 0, %v329
        %331 = vst [vmem:[%s259 + $0x40] sm:$0x8] %v330
        %v332 = vld [vmem:[%s259 + $0x4c] sm:$0x8]
        %v333 = vsel %vm313, 0, %v332
        %334 = vst [vmem:[%s259 + $0x4c] sm:$0x8] %v333
        %v335 = vld [vmem:[%s259 + $0x58] sm:$0x8]
        %v336 = vsel %vm313, 0, %v335
        %337 = vst [vmem:[%s259 + $0x58] sm:$0x8] %v336
        %v338 = vld [vmem:[%s259 + $0x64] sm:$0x8]
        %v339 = vsel %vm313, 0, %v338
        %340 = vst [vmem:[%s259 + $0x64] sm:$0x8] %v339
        %v341 = vld [vmem:[%s259 + $0x70] sm:$0x8]
        %v342 = vsel %vm313, 0, %v341
        %343 = vst [vmem:[%s259 + $0x70] sm:$0x8] %v342
        %v344 = vld [vmem:[%s259 + $0x7c] sm:$0x8]
        %v345 = vsel %vm313, 0, %v344
        %346 = vst [vmem:[%s259 + $0x7c] sm:$0x8] %v345
        %v347 = vld [vmem:[%s259 + $0x88] sm:$0x8]
        %v348 = vsel %vm313, 0, %v347
        %349 = vst [vmem:[%s259 + $0x88] sm:$0x8] %v348
        %v350 = vld [vmem:[%s259 + $0x94] sm:$0x8]
        %v351 = vsel %vm313, 0, %v350
        %352 = vst [vmem:[%s259 + $0x94] sm:$0x8] %v351
        %v353 = vld [vmem:[%s259 + $0xa0] sm:$0x8]
        %v354 = vsel %vm313, 0, %v353
        %355 = vst [vmem:[%s259 + $0xa0] sm:$0x8] %v354
        %v356 = vld [vmem:[%s259 + $0xac] sm:$0x8]
        %v357 = vsel %vm313, 0, %v356
        %358 = vst [vmem:[%s259 + $0xac] sm:$0x8] %v357
        %v359 = vld [vmem:[%s259 + $0xb8] sm:$0x8]
        %v360 = vsel %vm313, 0, %v359
        %361 = vst [vmem:[%s259 + $0xb8] sm:$0x8] %v360
        %v362 = vld [vmem:[%s249] sm:$0xf]
        %v363 = vld [vmem:[%s249 + $0x4] sm:$0xf]
        %v364 = vld [vmem:[%s249 + $0x8] sm:$0xf]
        %v365 = vld [vmem:[%s249 + $0xc] sm:$0xf]
        %v366 = vld [vmem:[%s249 + $0x10] sm:$0xf]
        %v367 = vld [vmem:[%s249 + $0x14] sm:$0xf]
        %v368 = vld [vmem:[%s249 + $0x18] sm:$0xf]
        %v369 = vld [vmem:[%s249 + $0x1c] sm:$0xf]
        %v370 = vld [vmem:[%s249 + $0x20] sm:$0xf]
        %v371 = vld [vmem:[%s249 + $0x24] sm:$0xf]
        %v372 = vld [vmem:[%s249 + $0x28] sm:$0xf]
        %v373 = vld [vmem:[%s249 + $0x2c] sm:$0xf]
        %v374 = vld [vmem:[%s249 + $0x30] sm:$0xf]
        %v375 = vld [vmem:[%s249 + $0x34] sm:$0xf]
        %v376 = vld [vmem:[%s249 + $0x38] sm:$0xf]
        %v377 = vld [vmem:[%s249 + $0x3c] sm:$0xf]
        %v378 = vld [vmem:[%s249 + $0x40] sm:$0xf]
        %v379 = vld [vmem:[%s249 + $0x44] sm:$0xf]
        %v380 = vld [vmem:[%s249 + $0x48] sm:$0xf]
        %v381 = vld [vmem:[%s249 + $0x4c] sm:$0xf]
        %v382 = vld [vmem:[%s249 + $0x50] sm:$0xf]
        %v383 = vld [vmem:[%s249 + $0x54] sm:$0xf]
        %v384 = vld [vmem:[%s249 + $0x58] sm:$0xf]
        %v385 = vld [vmem:[%s249 + $0x5c] sm:$0xf]
        %v386 = vld [vmem:[%s249 + $0x60] sm:$0xf]
        %v387 = vld [vmem:[%s249 + $0x64] sm:$0xf]
        %v388 = vld [vmem:[%s249 + $0x68] sm:$0xf]
        %v389 = vld [vmem:[%s249 + $0x6c] sm:$0xf]
        %v390 = vld [vmem:[%s249 + $0x70] sm:$0xf]
        %v391 = vld [vmem:[%s249 + $0x74] sm:$0xf]
        %v392 = vld [vmem:[%s249 + $0x78] sm:$0xf]
        %v393 = vld [vmem:[%s249 + $0x7c] sm:$0xf]
        %vm394 = vsmask.f32 4368
        %vm395 = vmor %vm261, %vm394
        %v397 = vshrl.u32 %v362, 16
        %v399 = vrot.slane %v397, 7
        %v400 = vshll.u32 %v362, 16
        %v402 = vor.u32 %v399, %v400
        %v403 = vrot.slane %v399, 4
        %v405 = vshrl.u32 %v363, 16
        %v407 = vrot.slane %v405, 7
        %v408 = vshll.u32 %v363, 16
        %v410 = vor.u32 %v407, %v408
        %v411 = vsel %vm395, %v403, %v410
        %v412 = vrot.slane %v407, 4
        %v414 = vshrl.u32 %v364, 16
        %v416 = vrot.slane %v414, 7
        %v417 = vshll.u32 %v364, 16
        %v419 = vor.u32 %v416, %v417
        %v420 = vrot.slane %v416, 4
        %v422 = vshrl.u32 %v365, 16
        %v424 = vrot.slane %v422, 7
        %v425 = vshll.u32 %v365, 16
        %v427 = vor.u32 %v424, %v425
        %v428 = vsel %vm395, %v420, %v427
        %v429 = vrot.slane %v424, 4
        %v431 = vshrl.u32 %v366, 16
        %v433 = vrot.slane %v431, 7
        %v434 = vshll.u32 %v366, 16
        %v436 = vor.u32 %v433, %v434
        %v437 = vrot.slane %v433, 4
        %v439 = vshrl.u32 %v367, 16
        %v441 = vrot.slane %v439, 7
        %v442 = vshll.u32 %v367, 16
        %v444 = vor.u32 %v441, %v442
        %v445 = vsel %vm395, %v437, %v444
        %v446 = vrot.slane %v441, 4
        %v448 = vshrl.u32 %v368, 16
        %v450 = vrot.slane %v448, 7
        %v451 = vshll.u32 %v368, 16
        %v453 = vor.u32 %v450, %v451
        %v454 = vrot.slane %v450, 4
        %v456 = vshrl.u32 %v369, 16
        %v458 = vrot.slane %v456, 7
        %v459 = vshll.u32 %v369, 16
        %v461 = vor.u32 %v458, %v459
        %v462 = vsel %vm395, %v454, %v461
        %v463 = vrot.slane %v458, 4
        %v465 = vshrl.u32 %v370, 16
        %v467 = vrot.slane %v465, 7
        %v468 = vshll.u32 %v370, 16
        %v470 = vor.u32 %v467, %v468
        %v471 = vrot.slane %v467, 4
        %v473 = vshrl.u32 %v371, 16
        %v475 = vrot.slane %v473, 7
        %v476 = vshll.u32 %v371, 16
        %v478 = vor.u32 %v475, %v476
        %v479 = vsel %vm395, %v471, %v478
        %v480 = vrot.slane %v475, 4
        %v482 = vshrl.u32 %v372, 16
        %v484 = vrot.slane %v482, 7
        %v485 = vshll.u32 %v372, 16
        %v487 = vor.u32 %v484, %v485
        %v488 = vrot.slane %v484, 4
        %v490 = vshrl.u32 %v373, 16
        %v492 = vrot.slane %v490, 7
        %v493 = vshll.u32 %v373, 16
        %v495 = vor.u32 %v492, %v493
        %v496 = vsel %vm395, %v488, %v495
        %v497 = vrot.slane %v492, 4
        %v499 = vshrl.u32 %v374, 16
        %v501 = vrot.slane %v499, 7
        %v502 = vshll.u32 %v374, 16
        %v504 = vor.u32 %v501, %v502
        %v505 = vrot.slane %v501, 4
        %v507 = vshrl.u32 %v375, 16
        %v509 = vrot.slane %v507, 7
        %v510 = vshll.u32 %v375, 16
        %v512 = vor.u32 %v509, %v510
        %v513 = vsel %vm395, %v505, %v512
        %v514 = vrot.slane %v509, 4
        %v516 = vshrl.u32 %v376, 16
        %v518 = vrot.slane %v516, 7
        %v519 = vshll.u32 %v376, 16
        %v521 = vor.u32 %v518, %v519
        %v522 = vrot.slane %v518, 4
        %v524 = vshrl.u32 %v377, 16
        %v526 = vrot.slane %v524, 7
        %v527 = vshll.u32 %v377, 16
        %v529 = vor.u32 %v526, %v527
        %v530 = vsel %vm395, %v522, %v529
        %v531 = vrot.slane %v526, 4
        %v533 = vshrl.u32 %v378, 16
        %v535 = vrot.slane %v533, 7
        %v536 = vshll.u32 %v378, 16
        %v538 = vor.u32 %v535, %v536
        %v539 = vrot.slane %v535, 4
        %v541 = vshrl.u32 %v379, 16
        %v543 = vrot.slane %v541, 7
        %v544 = vshll.u32 %v379, 16
        %v546 = vor.u32 %v543, %v544
        %v547 = vsel %vm395, %v539, %v546
        %v548 = vrot.slane %v543, 4
        %v550 = vshrl.u32 %v380, 16
        %v552 = vrot.slane %v550, 7
        %v553 = vshll.u32 %v380, 16
        %v555 = vor.u32 %v552, %v553
        %v556 = vrot.slane %v552, 4
        %v558 = vshrl.u32 %v381, 16
        %v560 = vrot.slane %v558, 7
        %v561 = vshll.u32 %v381, 16
        %v563 = vor.u32 %v560, %v561
        %v564 = vsel %vm395, %v556, %v563
        %v565 = vrot.slane %v560, 4
        %v567 = vshrl.u32 %v382, 16
        %v569 = vrot.slane %v567, 7
        %v570 = vshll.u32 %v382, 16
        %v572 = vor.u32 %v569, %v570
        %v573 = vrot.slane %v569, 4
        %v575 = vshrl.u32 %v383, 16
        %v577 = vrot.slane %v575, 7
        %v578 = vshll.u32 %v383, 16
        %v580 = vor.u32 %v577, %v578
        %v581 = vsel %vm395, %v573, %v580
        %v582 = vrot.slane %v577, 4
        %v584 = vshrl.u32 %v384, 16
        %v586 = vrot.slane %v584, 7
        %v587 = vshll.u32 %v384, 16
        %v589 = vor.u32 %v586, %v587
        %v590 = vrot.slane %v586, 4
        %v592 = vshrl.u32 %v385, 16
        %v594 = vrot.slane %v592, 7
        %v595 = vshll.u32 %v385, 16
        %v597 = vor.u32 %v594, %v595
        %v598 = vsel %vm395, %v590, %v597
        %v599 = vrot.slane %v594, 4
        %v601 = vshrl.u32 %v386, 16
        %v603 = vrot.slane %v601, 7
        %v604 = vshll.u32 %v386, 16
        %v606 = vor.u32 %v603, %v604
        %v607 = vrot.slane %v603, 4
        %v609 = vshrl.u32 %v387, 16
        %v611 = vrot.slane %v609, 7
        %v612 = vshll.u32 %v387, 16
        %v614 = vor.u32 %v611, %v612
        %v615 = vsel %vm395, %v607, %v614
        %v616 = vrot.slane %v611, 4
        %v618 = vshrl.u32 %v388, 16
        %v620 = vrot.slane %v618, 7
        %v621 = vshll.u32 %v388, 16
        %v623 = vor.u32 %v620, %v621
        %v624 = vrot.slane %v620, 4
        %v626 = vshrl.u32 %v389, 16
        %v628 = vrot.slane %v626, 7
        %v629 = vshll.u32 %v389, 16
        %v631 = vor.u32 %v628, %v629
        %v632 = vsel %vm395, %v624, %v631
        %v633 = vrot.slane %v628, 4
        %v635 = vshrl.u32 %v390, 16
        %v637 = vrot.slane %v635, 7
        %v638 = vshll.u32 %v390, 16
        %v640 = vor.u32 %v637, %v638
        %v641 = vrot.slane %v637, 4
        %v643 = vshrl.u32 %v391, 16
        %v645 = vrot.slane %v643, 7
        %v646 = vshll.u32 %v391, 16
        %v648 = vor.u32 %v645, %v646
        %v649 = vsel %vm395, %v641, %v648
        %v650 = vrot.slane %v645, 4
        %v652 = vshrl.u32 %v392, 16
        %v654 = vrot.slane %v652, 7
        %v655 = vshll.u32 %v392, 16
        %v657 = vor.u32 %v654, %v655
        %v658 = vrot.slane %v654, 4
        %v660 = vshrl.u32 %v393, 16
        %v662 = vrot.slane %v660, 7
        %v663 = vshll.u32 %v393, 16
        %v665 = vor.u32 %v662, %v663
        %v666 = vsel %vm395, %v658, %v665
        %v667 = vrot.slane %v662, 4
        %vm716 = vcmask 27648
        %vm717 = vsmask.f32 7938
        %vm718 = vmand %vm716, %vm717
        %v719 = vld [vmem:[%s259] sm:$0xf]
        %v720 = vsel %vm718, %v402, %v719
        %721 = vst [vmem:[%s259] sm:$0xf] %v720
        %vm722 = vcmask 27648
        %723 = vst.msk [vmem:[%s259 + $0x4] sm:$0xf] %vm722, %v411
        %vm724 = vcmask 24576
        %vm725 = vmand %vm724, %vm261
        %v726 = vld [vmem:[%s259 + $0x8] sm:$0x1]
        %v727 = vsel %vm725, %v412, %v726
        %728 = vst [vmem:[%s259 + $0x8] sm:$0x1] %v727
        %v729 = vld [vmem:[%s259 + $0xc] sm:$0xf]
        %v730 = vsel %vm718, %v419, %v729
        %731 = vst [vmem:[%s259 + $0xc] sm:$0xf] %v730
        %732 = vst.msk [vmem:[%s259 + $0x10] sm:$0xf] %vm722, %v428
        %v733 = vld [vmem:[%s259 + $0x14] sm:$0x1]
        %v734 = vsel %vm725, %v429, %v733
        %735 = vst [vmem:[%s259 + $0x14] sm:$0x1] %v734
        %v736 = vld [vmem:[%s259 + $0x18] sm:$0xf]
        %v737 = vsel %vm718, %v436, %v736
        %738 = vst [vmem:[%s259 + $0x18] sm:$0xf] %v737
        %739 = vst.msk [vmem:[%s259 + $0x1c] sm:$0xf] %vm722, %v445
        %v740 = vld [vmem:[%s259 + $0x20] sm:$0x1]
        %v741 = vsel %vm725, %v446, %v740
        %742 = vst [vmem:[%s259 + $0x20] sm:$0x1] %v741
        %v743 = vld [vmem:[%s259 + $0x24] sm:$0xf]
        %v744 = vsel %vm718, %v453, %v743
        %745 = vst [vmem:[%s259 + $0x24] sm:$0xf] %v744
        %746 = vst.msk [vmem:[%s259 + $0x28] sm:$0xf] %vm722, %v462
        %v747 = vld [vmem:[%s259 + $0x2c] sm:$0x1]
        %v748 = vsel %vm725, %v463, %v747
        %749 = vst [vmem:[%s259 + $0x2c] sm:$0x1] %v748
        %v750 = vld [vmem:[%s259 + $0x30] sm:$0xf]
        %v751 = vsel %vm718, %v470, %v750
        %752 = vst [vmem:[%s259 + $0x30] sm:$0xf] %v751
        %753 = vst.msk [vmem:[%s259 + $0x34] sm:$0xf] %vm722, %v479
        %v754 = vld [vmem:[%s259 + $0x38] sm:$0x1]
        %v755 = vsel %vm725, %v480, %v754
        %756 = vst [vmem:[%s259 + $0x38] sm:$0x1] %v755
        %v757 = vld [vmem:[%s259 + $0x3c] sm:$0xf]
        %v758 = vsel %vm718, %v487, %v757
        %759 = vst [vmem:[%s259 + $0x3c] sm:$0xf] %v758
        %760 = vst.msk [vmem:[%s259 + $0x40] sm:$0xf] %vm722, %v496
        %v761 = vld [vmem:[%s259 + $0x44] sm:$0x1]
        %v762 = vsel %vm725, %v497, %v761
        %763 = vst [vmem:[%s259 + $0x44] sm:$0x1] %v762
        %v764 = vld [vmem:[%s259 + $0x48] sm:$0xf]
        %v765 = vsel %vm718, %v504, %v764
        %766 = vst [vmem:[%s259 + $0x48] sm:$0xf] %v765
        %767 = vst.msk [vmem:[%s259 + $0x4c] sm:$0xf] %vm722, %v513
        %v768 = vld [vmem:[%s259 + $0x50] sm:$0x1]
        %v769 = vsel %vm725, %v514, %v768
        %770 = vst [vmem:[%s259 + $0x50] sm:$0x1] %v769
        %v771 = vld [vmem:[%s259 + $0x54] sm:$0xf]
        %v772 = vsel %vm718, %v521, %v771
        %773 = vst [vmem:[%s259 + $0x54] sm:$0xf] %v772
        %774 = vst.msk [vmem:[%s259 + $0x58] sm:$0xf] %vm722, %v530
        %v775 = vld [vmem:[%s259 + $0x5c] sm:$0x1]
        %v776 = vsel %vm725, %v531, %v775
        %777 = vst [vmem:[%s259 + $0x5c] sm:$0x1] %v776
        %v778 = vld [vmem:[%s259 + $0x60] sm:$0xf]
        %v779 = vsel %vm718, %v538, %v778
        %780 = vst [vmem:[%s259 + $0x60] sm:$0xf] %v779
        %781 = vst.msk [vmem:[%s259 + $0x64] sm:$0xf] %vm722, %v547
        %v782 = vld [vmem:[%s259 + $0x68] sm:$0x1]
        %v783 = vsel %vm725, %v548, %v782
        %784 = vst [vmem:[%s259 + $0x68] sm:$0x1] %v783
        %v785 = vld [vmem:[%s259 + $0x6c] sm:$0xf]
        %v786 = vsel %vm718, %v555, %v785
        %787 = vst [vmem:[%s259 + $0x6c] sm:$0xf] %v786
        %788 = vst.msk [vmem:[%s259 + $0x70] sm:$0xf] %vm722, %v564
        %v789 = vld [vmem:[%s259 + $0x74] sm:$0x1]
        %v790 = vsel %vm725, %v565, %v789
        %791 = vst [vmem:[%s259 + $0x74] sm:$0x1] %v790
        %v792 = vld [vmem:[%s259 + $0x78] sm:$0xf]
        %v793 = vsel %vm718, %v572, %v792
        %794 = vst [vmem:[%s259 + $0x78] sm:$0xf] %v793
        %795 = vst.msk [vmem:[%s259 + $0x7c] sm:$0xf] %vm722, %v581
        %v796 = vld [vmem:[%s259 + $0x80] sm:$0x1]
        %v797 = vsel %vm725, %v582, %v796
        %798 = vst [vmem:[%s259 + $0x80] sm:$0x1] %v797
        %v799 = vld [vmem:[%s259 + $0x84] sm:$0xf]
        %v800 = vsel %vm718, %v589, %v799
        %801 = vst [vmem:[%s259 + $0x84] sm:$0xf] %v800
        %802 = vst.msk [vmem:[%s259 + $0x88] sm:$0xf] %vm722, %v598
        %v803 = vld [vmem:[%s259 + $0x8c] sm:$0x1]
        %v804 = vsel %vm725, %v599, %v803
        %805 = vst [vmem:[%s259 + $0x8c] sm:$0x1] %v804
        %v806 = vld [vmem:[%s259 + $0x90] sm:$0xf]
        %v807 = vsel %vm718, %v606, %v806
        %808 = vst [vmem:[%s259 + $0x90] sm:$0xf] %v807
        %809 = vst.msk [vmem:[%s259 + $0x94] sm:$0xf] %vm722, %v615
        %v810 = vld [vmem:[%s259 + $0x98] sm:$0x1]
        %v811 = vsel %vm725, %v616, %v810
        %812 = vst [vmem:[%s259 + $0x98] sm:$0x1] %v811
        %v813 = vld [vmem:[%s259 + $0x9c] sm:$0xf]
        %v814 = vsel %vm718, %v623, %v813
        %815 = vst [vmem:[%s259 + $0x9c] sm:$0xf] %v814
        %816 = vst.msk [vmem:[%s259 + $0xa0] sm:$0xf] %vm722, %v632
        %v817 = vld [vmem:[%s259 + $0xa4] sm:$0x1]
        %v818 = vsel %vm725, %v633, %v817
        %819 = vst [vmem:[%s259 + $0xa4] sm:$0x1] %v818
        %v820 = vld [vmem:[%s259 + $0xa8] sm:$0xf]
        %v821 = vsel %vm718, %v640, %v820
        %822 = vst [vmem:[%s259 + $0xa8] sm:$0xf] %v821
        %823 = vst.msk [vmem:[%s259 + $0xac] sm:$0xf] %vm722, %v649
        %v824 = vld [vmem:[%s259 + $0xb0] sm:$0x1]
        %v825 = vsel %vm725, %v650, %v824
        %826 = vst [vmem:[%s259 + $0xb0] sm:$0x1] %v825
        %v827 = vld [vmem:[%s259 + $0xb4] sm:$0xf]
        %v828 = vsel %vm718, %v657, %v827
        %829 = vst [vmem:[%s259 + $0xb4] sm:$0xf] %v828
        %830 = vst.msk [vmem:[%s259 + $0xb8] sm:$0xf] %vm722, %v666
        %v831 = vld [vmem:[%s259 + $0xbc] sm:$0x1]
        %v832 = vsel %vm725, %v667, %v831
        %833 = vst [vmem:[%s259 + $0xbc] sm:$0x1] %v832
        %866 = vrot.lane.b32.xlu0 %v362, 4
        %v867 = vpop.permute.xlu0 %866
        %868 = vrot.lane.b32.xlu0 %v363, 4
        %v869 = vpop.permute.xlu0 %868
        %870 = vrot.lane.b32.xlu0 %v364, 4
        %v871 = vpop.permute.xlu0 %870
        %872 = vrot.lane.b32.xlu0 %v365, 4
        %v873 = vpop.permute.xlu0 %872
        %874 = vrot.lane.b32.xlu0 %v366, 4
        %v875 = vpop.permute.xlu0 %874
        %876 = vrot.lane.b32.xlu0 %v367, 4
        %v877 = vpop.permute.xlu0 %876
        %878 = vrot.lane.b32.xlu0 %v368, 4
        %v879 = vpop.permute.xlu0 %878
        %880 = vrot.lane.b32.xlu0 %v369, 4
        %v881 = vpop.permute.xlu0 %880
        %882 = vrot.lane.b32.xlu0 %v370, 4
        %v883 = vpop.permute.xlu0 %882
        %884 = vrot.lane.b32.xlu0 %v371, 4
        %v885 = vpop.permute.xlu0 %884
        %886 = vrot.lane.b32.xlu0 %v372, 4
        %v887 = vpop.permute.xlu0 %886
        %888 = vrot.lane.b32.xlu0 %v373, 4
        %v889 = vpop.permute.xlu0 %888
        %890 = vrot.lane.b32.xlu0 %v374, 4
        %v891 = vpop.permute.xlu0 %890
        %892 = vrot.lane.b32.xlu0 %v375, 4
        %v893 = vpop.permute.xlu0 %892
        %894 = vrot.lane.b32.xlu0 %v376, 4
        %v895 = vpop.permute.xlu0 %894
        %896 = vrot.lane.b32.xlu0 %v377, 4
        %v897 = vpop.permute.xlu0 %896
        %898 = vrot.lane.b32.xlu0 %v378, 4
        %v899 = vpop.permute.xlu0 %898
        %900 = vrot.lane.b32.xlu0 %v379, 4
        %v901 = vpop.permute.xlu0 %900
        %902 = vrot.lane.b32.xlu0 %v380, 4
        %v903 = vpop.permute.xlu0 %902
        %904 = vrot.lane.b32.xlu0 %v381, 4
        %v905 = vpop.permute.xlu0 %904
        %906 = vrot.lane.b32.xlu0 %v382, 4
        %v907 = vpop.permute.xlu0 %906
        %908 = vrot.lane.b32.xlu0 %v383, 4
        %v909 = vpop.permute.xlu0 %908
        %910 = vrot.lane.b32.xlu0 %v384, 4
        %v911 = vpop.permute.xlu0 %910
        %912 = vrot.lane.b32.xlu0 %v385, 4
        %v913 = vpop.permute.xlu0 %912
        %914 = vrot.lane.b32.xlu0 %v386, 4
        %v915 = vpop.permute.xlu0 %914
        %916 = vrot.lane.b32.xlu0 %v387, 4
        %v917 = vpop.permute.xlu0 %916
        %918 = vrot.lane.b32.xlu0 %v388, 4
        %v919 = vpop.permute.xlu0 %918
        %920 = vrot.lane.b32.xlu0 %v389, 4
        %v921 = vpop.permute.xlu0 %920
        %922 = vrot.lane.b32.xlu0 %v390, 4
        %v923 = vpop.permute.xlu0 %922
        %924 = vrot.lane.b32.xlu0 %v391, 4
        %v925 = vpop.permute.xlu0 %924
        %926 = vrot.lane.b32.xlu0 %v392, 4
        %v927 = vpop.permute.xlu0 %926
        %928 = vrot.lane.b32.xlu0 %v393, 4
        %v929 = vpop.permute.xlu0 %928
        %vm962 = vcmask 60448
        %963 = vst.msk [vmem:[%s259] sm:$0xf] %vm962, %v867
        %964 = vst.msk [vmem:[%s259 + $0x4] sm:$0xf] %vm962, %v869
        %965 = vst.msk [vmem:[%s259 + $0xc] sm:$0xf] %vm962, %v871
        %966 = vst.msk [vmem:[%s259 + $0x10] sm:$0xf] %vm962, %v873
        %967 = vst.msk [vmem:[%s259 + $0x18] sm:$0xf] %vm962, %v875
        %968 = vst.msk [vmem:[%s259 + $0x1c] sm:$0xf] %vm962, %v877
        %969 = vst.msk [vmem:[%s259 + $0x24] sm:$0xf] %vm962, %v879
        %970 = vst.msk [vmem:[%s259 + $0x28] sm:$0xf] %vm962, %v881
        %971 = vst.msk [vmem:[%s259 + $0x30] sm:$0xf] %vm962, %v883
        %972 = vst.msk [vmem:[%s259 + $0x34] sm:$0xf] %vm962, %v885
        %973 = vst.msk [vmem:[%s259 + $0x3c] sm:$0xf] %vm962, %v887
        %974 = vst.msk [vmem:[%s259 + $0x40] sm:$0xf] %vm962, %v889
        %975 = vst.msk [vmem:[%s259 + $0x48] sm:$0xf] %vm962, %v891
        %976 = vst.msk [vmem:[%s259 + $0x4c] sm:$0xf] %vm962, %v893
        %977 = vst.msk [vmem:[%s259 + $0x54] sm:$0xf] %vm962, %v895
        %978 = vst.msk [vmem:[%s259 + $0x58] sm:$0xf] %vm962, %v897
        %979 = vst.msk [vmem:[%s259 + $0x60] sm:$0xf] %vm962, %v899
        %980 = vst.msk [vmem:[%s259 + $0x64] sm:$0xf] %vm962, %v901
        %981 = vst.msk [vmem:[%s259 + $0x6c] sm:$0xf] %vm962, %v903
        %982 = vst.msk [vmem:[%s259 + $0x70] sm:$0xf] %vm962, %v905
        %983 = vst.msk [vmem:[%s259 + $0x78] sm:$0xf] %vm962, %v907
        %984 = vst.msk [vmem:[%s259 + $0x7c] sm:$0xf] %vm962, %v909
        %985 = vst.msk [vmem:[%s259 + $0x84] sm:$0xf] %vm962, %v911
        %986 = vst.msk [vmem:[%s259 + $0x88] sm:$0xf] %vm962, %v913
        %987 = vst.msk [vmem:[%s259 + $0x90] sm:$0xf] %vm962, %v915
        %988 = vst.msk [vmem:[%s259 + $0x94] sm:$0xf] %vm962, %v917
        %989 = vst.msk [vmem:[%s259 + $0x9c] sm:$0xf] %vm962, %v919
        %990 = vst.msk [vmem:[%s259 + $0xa0] sm:$0xf] %vm962, %v921
        %991 = vst.msk [vmem:[%s259 + $0xa8] sm:$0xf] %vm962, %v923
        %992 = vst.msk [vmem:[%s259 + $0xac] sm:$0xf] %vm962, %v925
        %993 = vst.msk [vmem:[%s259 + $0xb4] sm:$0xf] %vm962, %v927
        %994 = vst.msk [vmem:[%s259 + $0xb8] sm:$0xf] %vm962, %v929
        %vm995 = vsmask.f32 3328
        %vm996 = vsmask.f32 7440
        %vm997 = vmor %vm995, %vm996
        %v998 = vrot.slane %v397, 4
        %v999 = vrot.slane %v400, 5
        %v1000 = vor.u32 %v998, %v999
        %v1001 = vrot.slane %v1000, 4
        %v1002 = vrot.slane %v408, 5
        %v1003 = vsel %vm997, %v1001, %v1002
        %v1004 = vrot.slane %v405, 4
        %v1005 = vor.u32 %v1004, %v1002
        %v1006 = vrot.slane %v1005, 4
        %v1007 = vrot.slane %v414, 4
        %v1008 = vrot.slane %v417, 5
        %v1009 = vor.u32 %v1007, %v1008
        %v1010 = vrot.slane %v1009, 4
        %v1011 = vrot.slane %v425, 5
        %v1012 = vsel %vm997, %v1010, %v1011
        %v1013 = vrot.slane %v422, 4
        %v1014 = vor.u32 %v1013, %v1011
        %v1015 = vrot.slane %v1014, 4
        %v1016 = vrot.slane %v431, 4
        %v1017 = vrot.slane %v434, 5
        %v1018 = vor.u32 %v1016, %v1017
        %v1019 = vrot.slane %v1018, 4
        %v1020 = vrot.slane %v442, 5
        %v1021 = vsel %vm997, %v1019, %v1020
        %v1022 = vrot.slane %v439, 4
        %v1023 = vor.u32 %v1022, %v1020
        %v1024 = vrot.slane %v1023, 4
        %v1025 = vrot.slane %v448, 4
        %v1026 = vrot.slane %v451, 5
        %v1027 = vor.u32 %v1025, %v1026
        %v1028 = vrot.slane %v1027, 4
        %v1029 = vrot.slane %v459, 5
        %v1030 = vsel %vm997, %v1028, %v1029
        %v1031 = vrot.slane %v456, 4
        %v1032 = vor.u32 %v1031, %v1029
        %v1033 = vrot.slane %v1032, 4
        %v1034 = vrot.slane %v465, 4
        %v1035 = vrot.slane %v468, 5
        %v1036 = vor.u32 %v1034, %v1035
        %v1037 = vrot.slane %v1036, 4
        %v1038 = vrot.slane %v476, 5
        %v1039 = vsel %vm997, %v1037, %v1038
        %v1040 = vrot.slane %v473, 4
        %v1041 = vor.u32 %v1040, %v1038
        %v1042 = vrot.slane %v1041, 4
        %v1043 = vrot.slane %v482, 4
        %v1044 = vrot.slane %v485, 5
        %v1045 = vor.u32 %v1043, %v1044
        %v1046 = vrot.slane %v1045, 4
        %v1047 = vrot.slane %v493, 5
        %v1048 = vsel %vm997, %v1046, %v1047
        %v1049 = vrot.slane %v490, 4
        %v1050 = vor.u32 %v1049, %v1047
        %v1051 = vrot.slane %v1050, 4
        %v1052 = vrot.slane %v499, 4
        %v1053 = vrot.slane %v502, 5
        %v1054 = vor.u32 %v1052, %v1053
        %v1055 = vrot.slane %v1054, 4
        %v1056 = vrot.slane %v510, 5
        %v1057 = vsel %vm997, %v1055, %v1056
        %v1058 = vrot.slane %v507, 4
        %v1059 = vor.u32 %v1058, %v1056
        %v1060 = vrot.slane %v1059, 4
        %v1061 = vrot.slane %v516, 4
        %v1062 = vrot.slane %v519, 5
        %v1063 = vor.u32 %v1061, %v1062
        %v1064 = vrot.slane %v1063, 4
        %v1065 = vrot.slane %v527, 5
        %v1066 = vsel %vm997, %v1064, %v1065
        %v1067 = vrot.slane %v524, 4
        %v1068 = vor.u32 %v1067, %v1065
        %v1069 = vrot.slane %v1068, 4
        %v1070 = vrot.slane %v533, 4
        %v1071 = vrot.slane %v536, 5
        %v1072 = vor.u32 %v1070, %v1071
        %v1073 = vrot.slane %v1072, 4
        %v1074 = vrot.slane %v544, 5
        %v1075 = vsel %vm997, %v1073, %v1074
        %v1076 = vrot.slane %v541, 4
        %v1077 = vor.u32 %v1076, %v1074
        %v1078 = vrot.slane %v1077, 4
        %v1079 = vrot.slane %v550, 4
        %v1080 = vrot.slane %v553, 5
        %v1081 = vor.u32 %v1079, %v1080
        %v1082 = vrot.slane %v1081, 4
        %v1083 = vrot.slane %v561, 5
        %v1084 = vsel %vm997, %v1082, %v1083
        %v1085 = vrot.slane %v558, 4
        %v1086 = vor.u32 %v1085, %v1083
        %v1087 = vrot.slane %v1086, 4
        %v1088 = vrot.slane %v567, 4
        %v1089 = vrot.slane %v570, 5
        %v1090 = vor.u32 %v1088, %v1089
        %v1091 = vrot.slane %v1090, 4
        %v1092 = vrot.slane %v578, 5
        %v1093 = vsel %vm997, %v1091, %v1092
        %v1094 = vrot.slane %v575, 4
        %v1095 = vor.u32 %v1094, %v1092
        %v1096 = vrot.slane %v1095, 4
        %v1097 = vrot.slane %v584, 4
        %v1098 = vrot.slane %v587, 5
        %v1099 = vor.u32 %v1097, %v1098
        %v1100 = vrot.slane %v1099, 4
        %v1101 = vrot.slane %v595, 5
        %v1102 = vsel %vm997, %v1100, %v1101
        %v1103 = vrot.slane %v592, 4
        %v1104 = vor.u32 %v1103, %v1101
        %v1105 = vrot.slane %v1104, 4
        %v1106 = vrot.slane %v601, 4
        %v1107 = vrot.slane %v604, 5
        %v1108 = vor.u32 %v1106, %v1107
        %v1109 = vrot.slane %v1108, 4
        %v1110 = vrot.slane %v612, 5
        %v1111 = vsel %vm997, %v1109, %v1110
        %v1112 = vrot.slane %v609, 4
        %v1113 = vor.u32 %v1112, %v1110
        %v1114 = vrot.slane %v1113, 4
        %v1115 = vrot.slane %v618, 4
        %v1116 = vrot.slane %v621, 5
        %v1117 = vor.u32 %v1115, %v1116
        %v1118 = vrot.slane %v1117, 4
        %v1119 = vrot.slane %v629, 5
        %v1120 = vsel %vm997, %v1118, %v1119
        %v1121 = vrot.slane %v626, 4
        %v1122 = vor.u32 %v1121, %v1119
        %v1123 = vrot.slane %v1122, 4
        %v1124 = vrot.slane %v635, 4
        %v1125 = vrot.slane %v638, 5
        %v1126 = vor.u32 %v1124, %v1125
        %v1127 = vrot.slane %v1126, 4
        %v1128 = vrot.slane %v646, 5
        %v1129 = vsel %vm997, %v1127, %v1128
        %v1130 = vrot.slane %v643, 4
        %v1131 = vor.u32 %v1130, %v1128
        %v1132 = vrot.slane %v1131, 4
        %v1133 = vrot.slane %v652, 4
        %v1134 = vrot.slane %v655, 5
        %v1135 = vor.u32 %v1133, %v1134
        %v1136 = vrot.slane %v1135, 4
        %v1137 = vrot.slane %v663, 5
        %v1138 = vsel %vm997, %v1136, %v1137
        %v1139 = vrot.slane %v660, 4
        %v1140 = vor.u32 %v1139, %v1137
        %v1141 = vrot.slane %v1140, 4
        %1142 = vrot.lane.b32.xlu0 %v1003, 8
        %v1143 = vpop.permute.xlu0 %1142
        %1144 = vrot.lane.b32.xlu0 %v1006, 8
        %v1145 = vpop.permute.xlu0 %1144
        %1146 = vrot.lane.b32.xlu0 %v1012, 8
        %v1147 = vpop.permute.xlu0 %1146
        %1148 = vrot.lane.b32.xlu0 %v1015, 8
        %v1149 = vpop.permute.xlu0 %1148
        %1150 = vrot.lane.b32.xlu0 %v1021, 8
        %v1151 = vpop.permute.xlu0 %1150
        %1152 = vrot.lane.b32.xlu0 %v1024, 8
        %v1153 = vpop.permute.xlu0 %1152
        %1154 = vrot.lane.b32.xlu0 %v1030, 8
        %v1155 = vpop.permute.xlu0 %1154
        %1156 = vrot.lane.b32.xlu0 %v1033, 8
        %v1157 = vpop.permute.xlu0 %1156
        %1158 = vrot.lane.b32.xlu0 %v1039, 8
        %v1159 = vpop.permute.xlu0 %1158
        %1160 = vrot.lane.b32.xlu0 %v1042, 8
        %v1161 = vpop.permute.xlu0 %1160
        %1162 = vrot.lane.b32.xlu0 %v1048, 8
        %v1163 = vpop.permute.xlu0 %1162
        %1164 = vrot.lane.b32.xlu0 %v1051, 8
        %v1165 = vpop.permute.xlu0 %1164
        %1166 = vrot.lane.b32.xlu0 %v1057, 8
        %v1167 = vpop.permute.xlu0 %1166
        %1168 = vrot.lane.b32.xlu0 %v1060, 8
        %v1169 = vpop.permute.xlu0 %1168
        %1170 = vrot.lane.b32.xlu0 %v1066, 8
        %v1171 = vpop.permute.xlu0 %1170
        %1172 = vrot.lane.b32.xlu0 %v1069, 8
        %v1173 = vpop.permute.xlu0 %1172
        %1174 = vrot.lane.b32.xlu0 %v1075, 8
        %v1175 = vpop.permute.xlu0 %1174
        %1176 = vrot.lane.b32.xlu0 %v1078, 8
        %v1177 = vpop.permute.xlu0 %1176
        %1178 = vrot.lane.b32.xlu0 %v1084, 8
        %v1179 = vpop.permute.xlu0 %1178
        %1180 = vrot.lane.b32.xlu0 %v1087, 8
        %v1181 = vpop.permute.xlu0 %1180
        %1182 = vrot.lane.b32.xlu0 %v1093, 8
        %v1183 = vpop.permute.xlu0 %1182
        %1184 = vrot.lane.b32.xlu0 %v1096, 8
        %v1185 = vpop.permute.xlu0 %1184
        %1186 = vrot.lane.b32.xlu0 %v1102, 8
        %v1187 = vpop.permute.xlu0 %1186
        %1188 = vrot.lane.b32.xlu0 %v1105, 8
        %v1189 = vpop.permute.xlu0 %1188
        %1190 = vrot.lane.b32.xlu0 %v1111, 8
        %v1191 = vpop.permute.xlu0 %1190
        %1192 = vrot.lane.b32.xlu0 %v1114, 8
        %v1193 = vpop.permute.xlu0 %1192
        %1194 = vrot.lane.b32.xlu0 %v1120, 8
        %v1195 = vpop.permute.xlu0 %1194
        %1196 = vrot.lane.b32.xlu0 %v1123, 8
        %v1197 = vpop.permute.xlu0 %1196
        %1198 = vrot.lane.b32.xlu0 %v1129, 8
        %v1199 = vpop.permute.xlu0 %1198
        %1200 = vrot.lane.b32.xlu0 %v1132, 8
        %v1201 = vpop.permute.xlu0 %1200
        %1202 = vrot.lane.b32.xlu0 %v1138, 8
        %v1203 = vpop.permute.xlu0 %1202
        %1204 = vrot.lane.b32.xlu0 %v1141, 8
        %v1205 = vpop.permute.xlu0 %1204
        %vm1238 = vcmask 93248
        %1239 = vst.msk [vmem:[%s259] sm:$0xf] %vm1238, %v1143
        %vm1240 = vcmask 93248
        %vm1241 = vmand %vm1240, %vm995
        %v1242 = vld [vmem:[%s259 + $0x4] sm:$0xf]
        %v1243 = vsel %vm1241, %v1145, %v1242
        %1244 = vst [vmem:[%s259 + $0x4] sm:$0xf] %v1243
        %1245 = vst.msk [vmem:[%s259 + $0xc] sm:$0xf] %vm1238, %v1147
        %v1246 = vld [vmem:[%s259 + $0x10] sm:$0xf]
        %v1247 = vsel %vm1241, %v1149, %v1246
        %1248 = vst [vmem:[%s259 + $0x10] sm:$0xf] %v1247
        %1249 = vst.msk [vmem:[%s259 + $0x18] sm:$0xf] %vm1238, %v1151
        %v1250 = vld [vmem:[%s259 + $0x1c] sm:$0xf]
        %v1251 = vsel %vm1241, %v1153, %v1250
        %1252 = vst [vmem:[%s259 + $0x1c] sm:$0xf] %v1251
        %1253 = vst.msk [vmem:[%s259 + $0x24] sm:$0xf] %vm1238, %v1155
        %v1254 = vld [vmem:[%s259 + $0x28] sm:$0xf]
        %v1255 = vsel %vm1241, %v1157, %v1254
        %1256 = vst [vmem:[%s259 + $0x28] sm:$0xf] %v1255
        %1257 = vst.msk [vmem:[%s259 + $0x30] sm:$0xf] %vm1238, %v1159
        %v1258 = vld [vmem:[%s259 + $0x34] sm:$0xf]
        %v1259 = vsel %vm1241, %v1161, %v1258
        %1260 = vst [vmem:[%s259 + $0x34] sm:$0xf] %v1259
        %1261 = vst.msk [vmem:[%s259 + $0x3c] sm:$0xf] %vm1238, %v1163
        %v1262 = vld [vmem:[%s259 + $0x40] sm:$0xf]
        %v1263 = vsel %vm1241, %v1165, %v1262
        %1264 = vst [vmem:[%s259 + $0x40] sm:$0xf] %v1263
        %1265 = vst.msk [vmem:[%s259 + $0x48] sm:$0xf] %vm1238, %v1167
        %v1266 = vld [vmem:[%s259 + $0x4c] sm:$0xf]
        %v1267 = vsel %vm1241, %v1169, %v1266
        %1268 = vst [vmem:[%s259 + $0x4c] sm:$0xf] %v1267
        %1269 = vst.msk [vmem:[%s259 + $0x54] sm:$0xf] %vm1238, %v1171
        %v1270 = vld [vmem:[%s259 + $0x58] sm:$0xf]
        %v1271 = vsel %vm1241, %v1173, %v1270
        %1272 = vst [vmem:[%s259 + $0x58] sm:$0xf] %v1271
        %1273 = vst.msk [vmem:[%s259 + $0x60] sm:$0xf] %vm1238, %v1175
        %v1274 = vld [vmem:[%s259 + $0x64] sm:$0xf]
        %v1275 = vsel %vm1241, %v1177, %v1274
        %1276 = vst [vmem:[%s259 + $0x64] sm:$0xf] %v1275
        %1277 = vst.msk [vmem:[%s259 + $0x6c] sm:$0xf] %vm1238, %v1179
        %v1278 = vld [vmem:[%s259 + $0x70] sm:$0xf]
        %v1279 = vsel %vm1241, %v1181, %v1278
        %1280 = vst [vmem:[%s259 + $0x70] sm:$0xf] %v1279
        %1281 = vst.msk [vmem:[%s259 + $0x78] sm:$0xf] %vm1238, %v1183
        %v1282 = vld [vmem:[%s259 + $0x7c] sm:$0xf]
        %v1283 = vsel %vm1241, %v1185, %v1282
        %1284 = vst [vmem:[%s259 + $0x7c] sm:$0xf] %v1283
        %1285 = vst.msk [vmem:[%s259 + $0x84] sm:$0xf] %vm1238, %v1187
        %v1286 = vld [vmem:[%s259 + $0x88] sm:$0xf]
        %v1287 = vsel %vm1241, %v1189, %v1286
        %1288 = vst [vmem:[%s259 + $0x88] sm:$0xf] %v1287
        %1289 = vst.msk [vmem:[%s259 + $0x90] sm:$0xf] %vm1238, %v1191
        %v1290 = vld [vmem:[%s259 + $0x94] sm:$0xf]
        %v1291 = vsel %vm1241, %v1193, %v1290
        %1292 = vst [vmem:[%s259 + $0x94] sm:$0xf] %v1291
        %1293 = vst.msk [vmem:[%s259 + $0x9c] sm:$0xf] %vm1238, %v1195
        %v1294 = vld [vmem:[%s259 + $0xa0] sm:$0xf]
        %v1295 = vsel %vm1241, %v1197, %v1294
        %1296 = vst [vmem:[%s259 + $0xa0] sm:$0xf] %v1295
        %1297 = vst.msk [vmem:[%s259 + $0xa8] sm:$0xf] %vm1238, %v1199
        %v1298 = vld [vmem:[%s259 + $0xac] sm:$0xf]
        %v1299 = vsel %vm1241, %v1201, %v1298
        %1300 = vst [vmem:[%s259 + $0xac] sm:$0xf] %v1299
        %1301 = vst.msk [vmem:[%s259 + $0xb4] sm:$0xf] %vm1238, %v1203
        %v1302 = vld [vmem:[%s259 + $0xb8] sm:$0xf]
        %v1303 = vsel %vm1241, %v1205, %v1302
        %1304 = vst [vmem:[%s259 + $0xb8] sm:$0xf] %v1303
        %v1305 = vld [vmem:[#allocation2] sm:$0xf]
        %v1306 = vld [vmem:[#allocation2 + $0x4] sm:$0xf]
        %v1307 = vld [vmem:[#allocation2 + $0x8] sm:$0xf]
        %v1308 = vld [vmem:[#allocation2 + $0xc] sm:$0xf]
        %v1309 = vld [vmem:[#allocation2 + $0x10] sm:$0xf]
        %v1310 = vld [vmem:[#allocation2 + $0x14] sm:$0xf]
        %v1311 = vld [vmem:[#allocation2 + $0x18] sm:$0xf]
        %v1312 = vld [vmem:[#allocation2 + $0x1c] sm:$0xf]
        %v1313 = vld [vmem:[#allocation2 + $0x20] sm:$0xf]
        %v1314 = vld [vmem:[#allocation2 + $0x24] sm:$0xf]
        %v1315 = vld [vmem:[#allocation2 + $0x28] sm:$0xf]
        %v1316 = vld [vmem:[#allocation2 + $0x2c] sm:$0xf]
        %v1317 = vld [vmem:[#allocation2 + $0x30] sm:$0xf]
        %v1318 = vld [vmem:[#allocation2 + $0x34] sm:$0xf]
        %v1319 = vld [vmem:[#allocation2 + $0x38] sm:$0xf]
        %v1320 = vld [vmem:[#allocation2 + $0x3c] sm:$0xf]
        %v1321 = vld [vmem:[#allocation2 + $0x40] sm:$0xf]
        %v1322 = vld [vmem:[#allocation2 + $0x44] sm:$0xf]
        %v1323 = vld [vmem:[#allocation2 + $0x48] sm:$0xf]
        %v1324 = vld [vmem:[#allocation2 + $0x4c] sm:$0xf]
        %v1325 = vld [vmem:[#allocation2 + $0x50] sm:$0xf]
        %v1326 = vld [vmem:[#allocation2 + $0x54] sm:$0xf]
        %v1327 = vld [vmem:[#allocation2 + $0x58] sm:$0xf]
        %v1328 = vld [vmem:[#allocation2 + $0x5c] sm:$0xf]
        %v1329 = vld [vmem:[#allocation2 + $0x60] sm:$0xf]
        %v1330 = vld [vmem:[#allocation2 + $0x64] sm:$0xf]
        %v1331 = vld [vmem:[#allocation2 + $0x68] sm:$0xf]
        %v1332 = vld [vmem:[#allocation2 + $0x6c] sm:$0xf]
        %v1333 = vld [vmem:[#allocation2 + $0x70] sm:$0xf]
        %v1334 = vld [vmem:[#allocation2 + $0x74] sm:$0xf]
        %v1335 = vld [vmem:[#allocation2 + $0x78] sm:$0xf]
        %v1336 = vld [vmem:[#allocation2 + $0x7c] sm:$0xf]
        %v1337 = vld [vmem:[#allocation2 + $0x80] sm:$0xf]
        %v1338 = vld [vmem:[#allocation2 + $0x84] sm:$0xf]
        %v1339 = vld [vmem:[#allocation2 + $0x88] sm:$0xf]
        %v1340 = vld [vmem:[#allocation2 + $0x8c] sm:$0xf]
        %v1341 = vld [vmem:[#allocation2 + $0x90] sm:$0xf]
        %v1342 = vld [vmem:[#allocation2 + $0x94] sm:$0xf]
        %v1343 = vld [vmem:[#allocation2 + $0x98] sm:$0xf]
        %v1344 = vld [vmem:[#allocation2 + $0x9c] sm:$0xf]
        %v1345 = vld [vmem:[#allocation2 + $0xa0] sm:$0xf]
        %v1346 = vld [vmem:[#allocation2 + $0xa4] sm:$0xf]
        %v1347 = vld [vmem:[#allocation2 + $0xa8] sm:$0xf]
        %v1348 = vld [vmem:[#allocation2 + $0xac] sm:$0xf]
        %v1349 = vld [vmem:[#allocation2 + $0xb0] sm:$0xf]
        %v1350 = vld [vmem:[#allocation2 + $0xb4] sm:$0xf]
        %v1351 = vld [vmem:[#allocation2 + $0xb8] sm:$0xf]
        %v1352 = vld [vmem:[#allocation2 + $0xbc] sm:$0xf]
        %v1353 = vld [vmem:[%s1] sm:$0xf]
        %v1354 = vld [vmem:[%s1 + $0x4] sm:$0x3]
        %v1355 = vld [vmem:[%s259] sm:$0xf]
        %v1356 = vld [vmem:[%s259 + $0x4] sm:$0xf]
        %v1357 = vld [vmem:[%s259 + $0x8] sm:$0xf]
        %v1358 = vld [vmem:[%s259 + $0xc] sm:$0xf]
        %v1359 = vld [vmem:[%s259 + $0x10] sm:$0xf]
        %v1360 = vld [vmem:[%s259 + $0x14] sm:$0xf]
        %v1361 = vld [vmem:[%s259 + $0x18] sm:$0xf]
        %v1362 = vld [vmem:[%s259 + $0x1c] sm:$0xf]
        %v1363 = vld [vmem:[%s259 + $0x20] sm:$0xf]
        %v1364 = vld [vmem:[%s259 + $0x24] sm:$0xf]
        %v1365 = vld [vmem:[%s259 + $0x28] sm:$0xf]
        %v1366 = vld [vmem:[%s259 + $0x2c] sm:$0xf]
        %v1367 = vld [vmem:[%s259 + $0x30] sm:$0xf]
        %v1368 = vld [vmem:[%s259 + $0x34] sm:$0xf]
        %v1369 = vld [vmem:[%s259 + $0x38] sm:$0xf]
        %v1370 = vld [vmem:[%s259 + $0x3c] sm:$0xf]
        %v1371 = vld [vmem:[%s259 + $0x40] sm:$0xf]
        %v1372 = vld [vmem:[%s259 + $0x44] sm:$0xf]
        %v1373 = vld [vmem:[%s259 + $0x48] sm:$0xf]
        %v1374 = vld [vmem:[%s259 + $0x4c] sm:$0xf]
        %v1375 = vld [vmem:[%s259 + $0x50] sm:$0xf]
        %v1376 = vld [vmem:[%s259 + $0x54] sm:$0xf]
        %v1377 = vld [vmem:[%s259 + $0x58] sm:$0xf]
        %v1378 = vld [vmem:[%s259 + $0x5c] sm:$0xf]
        %v1379 = vld [vmem:[%s259 + $0x60] sm:$0xf]
        %v1380 = vld [vmem:[%s259 + $0x64] sm:$0xf]
        %v1381 = vld [vmem:[%s259 + $0x68] sm:$0xf]
        %v1382 = vld [vmem:[%s259 + $0x6c] sm:$0xf]
        %v1383 = vld [vmem:[%s259 + $0x70] sm:$0xf]
        %v1384 = vld [vmem:[%s259 + $0x74] sm:$0xf]
        %v1385 = vld [vmem:[%s259 + $0x78] sm:$0xf]
        %v1386 = vld [vmem:[%s259 + $0x7c] sm:$0xf]
        %v1387 = vld [vmem:[%s259 + $0x80] sm:$0xf]
        %v1388 = vld [vmem:[%s259 + $0x84] sm:$0xf]
        %v1389 = vld [vmem:[%s259 + $0x88] sm:$0xf]
        %v1390 = vld [vmem:[%s259 + $0x8c] sm:$0xf]
        %v1391 = vld [vmem:[%s259 + $0x90] sm:$0xf]
        %v1392 = vld [vmem:[%s259 + $0x94] sm:$0xf]
        %v1393 = vld [vmem:[%s259 + $0x98] sm:$0xf]
        %v1394 = vld [vmem:[%s259 + $0x9c] sm:$0xf]
        %v1395 = vld [vmem:[%s259 + $0xa0] sm:$0xf]
        %v1396 = vld [vmem:[%s259 + $0xa4] sm:$0xf]
        %v1397 = vld [vmem:[%s259 + $0xa8] sm:$0xf]
        %v1398 = vld [vmem:[%s259 + $0xac] sm:$0xf]
        %v1399 = vld [vmem:[%s259 + $0xb0] sm:$0xf]
        %v1400 = vld [vmem:[%s259 + $0xb4] sm:$0xf]
        %v1401 = vld [vmem:[%s259 + $0xb8] sm:$0xf]
        %v1402 = vld [vmem:[%s259 + $0xbc] sm:$0xf]
        %s1403 = scalar_lea.vmem %s1, 8
        %v1404 = vld [vmem:[%s1403] sm:$0xf]
        %v1405 = vld [vmem:[%s1403 + $0x4] sm:$0x3]
        %v1454 = vunpack.c.l.b16 %v1355
        %v1455 = vunpack.c.l.b16 %v1356
        %v1456 = vunpack.c.l.b16 %v1357
        %v1457 = vunpack.c.l.b16 %v1358
        %v1458 = vunpack.c.l.b16 %v1359
        %v1459 = vunpack.c.l.b16 %v1360
        %v1460 = vunpack.c.l.b16 %v1361
        %v1461 = vunpack.c.l.b16 %v1362
        %v1462 = vunpack.c.l.b16 %v1363
        %v1463 = vunpack.c.l.b16 %v1364
        %v1464 = vunpack.c.l.b16 %v1365
        %v1465 = vunpack.c.l.b16 %v1366
        %v1466 = vunpack.c.l.b16 %v1367
        %v1467 = vunpack.c.l.b16 %v1368
        %v1468 = vunpack.c.l.b16 %v1369
        %v1469 = vunpack.c.l.b16 %v1370
        %v1470 = vunpack.c.l.b16 %v1371
        %v1471 = vunpack.c.l.b16 %v1372
        %v1472 = vunpack.c.l.b16 %v1373
        %v1473 = vunpack.c.l.b16 %v1374
        %v1474 = vunpack.c.l.b16 %v1375
        %v1475 = vunpack.c.l.b16 %v1376
        %v1476 = vunpack.c.l.b16 %v1377
        %v1477 = vunpack.c.l.b16 %v1378
        %v1478 = vunpack.c.l.b16 %v1379
        %v1479 = vunpack.c.l.b16 %v1380
        %v1480 = vunpack.c.l.b16 %v1381
        %v1481 = vunpack.c.l.b16 %v1382
        %v1482 = vunpack.c.l.b16 %v1383
        %v1483 = vunpack.c.l.b16 %v1384
        %v1484 = vunpack.c.l.b16 %v1385
        %v1485 = vunpack.c.l.b16 %v1386
        %v1486 = vunpack.c.l.b16 %v1387
        %v1487 = vunpack.c.l.b16 %v1388
        %v1488 = vunpack.c.l.b16 %v1389
        %v1489 = vunpack.c.l.b16 %v1390
        %v1490 = vunpack.c.l.b16 %v1391
        %v1491 = vunpack.c.l.b16 %v1392
        %v1492 = vunpack.c.l.b16 %v1393
        %v1493 = vunpack.c.l.b16 %v1394
        %v1494 = vunpack.c.l.b16 %v1395
        %v1495 = vunpack.c.l.b16 %v1396
        %v1496 = vunpack.c.l.b16 %v1397
        %v1497 = vunpack.c.l.b16 %v1398
        %v1498 = vunpack.c.l.b16 %v1399
        %v1499 = vunpack.c.l.b16 %v1400
        %v1500 = vunpack.c.l.b16 %v1401
        %v1501 = vunpack.c.l.b16 %v1402
        %v1502 = vpack.c.b16 %v1455, %v1454
        %v1503 = vpack.c.b16 %v1457, %v1456
        %v1504 = vpack.c.b16 %v1459, %v1458
        %v1505 = vpack.c.b16 %v1461, %v1460
        %v1506 = vpack.c.b16 %v1463, %v1462
        %v1507 = vpack.c.b16 %v1465, %v1464
        %v1508 = vpack.c.b16 %v1467, %v1466
        %v1509 = vpack.c.b16 %v1469, %v1468
        %v1510 = vpack.c.b16 %v1471, %v1470
        %v1511 = vpack.c.b16 %v1473, %v1472
        %v1512 = vpack.c.b16 %v1475, %v1474
        %v1513 = vpack.c.b16 %v1477, %v1476
        %v1514 = vpack.c.b16 %v1479, %v1478
        %v1515 = vpack.c.b16 %v1481, %v1480
        %v1516 = vpack.c.b16 %v1483, %v1482
        %v1517 = vpack.c.b16 %v1485, %v1484
        %v1518 = vpack.c.b16 %v1487, %v1486
        %v1519 = vpack.c.b16 %v1489, %v1488
        %v1520 = vpack.c.b16 %v1491, %v1490
        %v1521 = vpack.c.b16 %v1493, %v1492
        %v1522 = vpack.c.b16 %v1495, %v1494
        %v1523 = vpack.c.b16 %v1497, %v1496
        %v1524 = vpack.c.b16 %v1499, %v1498
        %v1525 = vpack.c.b16 %v1501, %v1500
        %v1528 = vunpack.c.l.b16 %v1404
        %v1529 = vunpack.c.l.b16 %v1405
        %v1530 = vpack.c.b16 %v1529, %v1528
        %vm1531 = vcmask 97280
        %v1533 = vsel %vm1531, %v1502, 0
        %v1536 = vsel %vm1531, %v1503, 0
        %v1539 = vsel %vm1531, %v1504, 0
        %v1542 = vsel %vm1531, %v1505, 0
        %v1545 = vsel %vm1531, %v1506, 0
        %v1548 = vsel %vm1531, %v1507, 0
        %v1551 = vsel %vm1531, %v1508, 0
        %v1554 = vsel %vm1531, %v1509, 0
        %v1557 = vsel %vm1531, %v1510, 0
        %v1560 = vsel %vm1531, %v1511, 0
        %v1563 = vsel %vm1531, %v1512, 0
        %v1566 = vsel %vm1531, %v1513, 0
        %v1569 = vsel %vm1531, %v1514, 0
        %v1572 = vsel %vm1531, %v1515, 0
        %v1575 = vsel %vm1531, %v1516, 0
        %v1578 = vsel %vm1531, %v1517, 0
        %v1581 = vsel %vm1531, %v1518, 0
        %v1584 = vsel %vm1531, %v1519, 0
        %v1587 = vsel %vm1531, %v1520, 0
        %v1590 = vsel %vm1531, %v1521, 0
        %v1593 = vsel %vm1531, %v1522, 0
        %v1596 = vsel %vm1531, %v1523, 0
        %v1599 = vsel %vm1531, %v1524, 0
        %v1602 = vsel %vm1531, %v1525, 0
        %vm1604 = vcmask 1045504
        %v1606 = vsel %vm1604, %v1530, 0
        %1608 = vmatpush.bf16.msra.mxu0 0
        %1609 = vmatpush.bf16.msra.mxu0 0
        %1610 = vmatpush.bf16.msra.mxu0 0
        %1611 = vmatpush.bf16.msra.mxu0 0
        %1612 = vmatpush.bf16.msra.mxu0 0
        %1613 = vmatpush.bf16.msra.mxu0 0
        %1614 = vmatpush.bf16.msra.mxu0 0
        %1615 = vmatpush.bf16.msra.mxu0 %v1606
        %1616 = vmatmul.bf16.gmra.mxu0 %v1533
        %v1617 = vpop.f32.mrf.mxu0
        %v1618 = vadd.f32 0.0, %v1617
        %v1619 = vpop.f32.mrf.mxu0
        %v1620 = vadd.f32 0.0, %v1619
        %1621 = vmatmul.bf16.gmra.mxu0 %v1536
        %v1622 = vpop.f32.mrf.mxu0
        %v1623 = vadd.f32 0.0, %v1622
        %v1624 = vpop.f32.mrf.mxu0
        %v1625 = vadd.f32 0.0, %v1624
        %1626 = vmatmul.bf16.gmra.mxu0 %v1539
        %v1627 = vpop.f32.mrf.mxu0
        %v1628 = vadd.f32 0.0, %v1627
        %v1629 = vpop.f32.mrf.mxu0
        %v1630 = vadd.f32 0.0, %v1629
        %1631 = vmatmul.bf16.gmra.mxu0 %v1542
        %v1632 = vpop.f32.mrf.mxu0
        %v1633 = vadd.f32 0.0, %v1632
        %v1634 = vpop.f32.mrf.mxu0
        %v1635 = vadd.f32 0.0, %v1634
        %1636 = vmatmul.bf16.gmra.mxu0 %v1545
        %v1637 = vpop.f32.mrf.mxu0
        %v1638 = vadd.f32 0.0, %v1637
        %v1639 = vpop.f32.mrf.mxu0
        %v1640 = vadd.f32 0.0, %v1639
        %1641 = vmatmul.bf16.gmra.mxu0 %v1548
        %v1642 = vpop.f32.mrf.mxu0
        %v1643 = vadd.f32 0.0, %v1642
        %v1644 = vpop.f32.mrf.mxu0
        %v1645 = vadd.f32 0.0, %v1644
        %1646 = vmatmul.bf16.gmra.mxu0 %v1551
        %v1647 = vpop.f32.mrf.mxu0
        %v1648 = vadd.f32 0.0, %v1647
        %v1649 = vpop.f32.mrf.mxu0
        %v1650 = vadd.f32 0.0, %v1649
        %1651 = vmatmul.bf16.gmra.mxu0 %v1554
        %v1652 = vpop.f32.mrf.mxu0
        %v1653 = vadd.f32 0.0, %v1652
        %v1654 = vpop.f32.mrf.mxu0
        %v1655 = vadd.f32 0.0, %v1654
        %1656 = vmatmul.bf16.gmra.mxu0 %v1557
        %v1657 = vpop.f32.mrf.mxu0
        %v1658 = vadd.f32 0.0, %v1657
        %v1659 = vpop.f32.mrf.mxu0
        %v1660 = vadd.f32 0.0, %v1659
        %1661 = vmatmul.bf16.gmra.mxu0 %v1560
        %v1662 = vpop.f32.mrf.mxu0
        %v1663 = vadd.f32 0.0, %v1662
        %v1664 = vpop.f32.mrf.mxu0
        %v1665 = vadd.f32 0.0, %v1664
        %1666 = vmatmul.bf16.gmra.mxu0 %v1563
        %v1667 = vpop.f32.mrf.mxu0
        %v1668 = vadd.f32 0.0, %v1667
        %v1669 = vpop.f32.mrf.mxu0
        %v1670 = vadd.f32 0.0, %v1669
        %1671 = vmatmul.bf16.gmra.mxu0 %v1566
        %v1672 = vpop.f32.mrf.mxu0
        %v1673 = vadd.f32 0.0, %v1672
        %v1674 = vpop.f32.mrf.mxu0
        %v1675 = vadd.f32 0.0, %v1674
        %1676 = vmatmul.bf16.gmra.mxu0 %v1569
        %v1677 = vpop.f32.mrf.mxu0
        %v1678 = vadd.f32 0.0, %v1677
        %v1679 = vpop.f32.mrf.mxu0
        %v1680 = vadd.f32 0.0, %v1679
        %1681 = vmatmul.bf16.gmra.mxu0 %v1572
        %v1682 = vpop.f32.mrf.mxu0
        %v1683 = vadd.f32 0.0, %v1682
        %v1684 = vpop.f32.mrf.mxu0
        %v1685 = vadd.f32 0.0, %v1684
        %1686 = vmatmul.bf16.gmra.mxu0 %v1575
        %v1687 = vpop.f32.mrf.mxu0
        %v1688 = vadd.f32 0.0, %v1687
        %v1689 = vpop.f32.mrf.mxu0
        %v1690 = vadd.f32 0.0, %v1689
        %1691 = vmatmul.bf16.gmra.mxu0 %v1578
        %v1692 = vpop.f32.mrf.mxu0
        %v1693 = vadd.f32 0.0, %v1692
        %v1694 = vpop.f32.mrf.mxu0
        %v1695 = vadd.f32 0.0, %v1694
        %1696 = vmatmul.bf16.gmra.mxu0 %v1581
        %v1697 = vpop.f32.mrf.mxu0
        %v1698 = vadd.f32 0.0, %v1697
        %v1699 = vpop.f32.mrf.mxu0
        %v1700 = vadd.f32 0.0, %v1699
        %1701 = vmatmul.bf16.gmra.mxu0 %v1584
        %v1702 = vpop.f32.mrf.mxu0
        %v1703 = vadd.f32 0.0, %v1702
        %v1704 = vpop.f32.mrf.mxu0
        %v1705 = vadd.f32 0.0, %v1704
        %1706 = vmatmul.bf16.gmra.mxu0 %v1587
        %v1707 = vpop.f32.mrf.mxu0
        %v1708 = vadd.f32 0.0, %v1707
        %v1709 = vpop.f32.mrf.mxu0
        %v1710 = vadd.f32 0.0, %v1709
        %1711 = vmatmul.bf16.gmra.mxu0 %v1590
        %v1712 = vpop.f32.mrf.mxu0
        %v1713 = vadd.f32 0.0, %v1712
        %v1714 = vpop.f32.mrf.mxu0
        %v1715 = vadd.f32 0.0, %v1714
        %1716 = vmatmul.bf16.gmra.mxu0 %v1593
        %v1717 = vpop.f32.mrf.mxu0
        %v1718 = vadd.f32 0.0, %v1717
        %v1719 = vpop.f32.mrf.mxu0
        %v1720 = vadd.f32 0.0, %v1719
        %1721 = vmatmul.bf16.gmra.mxu0 %v1596
        %v1722 = vpop.f32.mrf.mxu0
        %v1723 = vadd.f32 0.0, %v1722
        %v1724 = vpop.f32.mrf.mxu0
        %v1725 = vadd.f32 0.0, %v1724
        %1726 = vmatmul.bf16.gmra.mxu0 %v1599
        %v1727 = vpop.f32.mrf.mxu0
        %v1728 = vadd.f32 0.0, %v1727
        %v1729 = vpop.f32.mrf.mxu0
        %v1730 = vadd.f32 0.0, %v1729
        %1731 = vmatmul.bf16.gmra.mxu0 %v1602
        %v1732 = vpop.f32.mrf.mxu0
        %v1733 = vadd.f32 0.0, %v1732
        %v1734 = vpop.f32.mrf.mxu0
        %v1735 = vadd.f32 0.0, %v1734
        %1736 = vdwg.mxu0
        %v1785 = vunpack.c.l.b16 %v1305
        %v1786 = vunpack.c.l.b16 %v1306
        %v1787 = vunpack.c.l.b16 %v1307
        %v1788 = vunpack.c.l.b16 %v1308
        %v1789 = vunpack.c.l.b16 %v1309
        %v1790 = vunpack.c.l.b16 %v1310
        %v1791 = vunpack.c.l.b16 %v1311
        %v1792 = vunpack.c.l.b16 %v1312
        %v1793 = vunpack.c.l.b16 %v1313
        %v1794 = vunpack.c.l.b16 %v1314
        %v1795 = vunpack.c.l.b16 %v1315
        %v1796 = vunpack.c.l.b16 %v1316
        %v1797 = vunpack.c.l.b16 %v1317
        %v1798 = vunpack.c.l.b16 %v1318
        %v1799 = vunpack.c.l.b16 %v1319
        %v1800 = vunpack.c.l.b16 %v1320
        %v1801 = vunpack.c.l.b16 %v1321
        %v1802 = vunpack.c.l.b16 %v1322
        %v1803 = vunpack.c.l.b16 %v1323
        %v1804 = vunpack.c.l.b16 %v1324
        %v1805 = vunpack.c.l.b16 %v1325
        %v1806 = vunpack.c.l.b16 %v1326
        %v1807 = vunpack.c.l.b16 %v1327
        %v1808 = vunpack.c.l.b16 %v1328
        %v1809 = vunpack.c.l.b16 %v1329
        %v1810 = vunpack.c.l.b16 %v1330
        %v1811 = vunpack.c.l.b16 %v1331
        %v1812 = vunpack.c.l.b16 %v1332
        %v1813 = vunpack.c.l.b16 %v1333
        %v1814 = vunpack.c.l.b16 %v1334
        %v1815 = vunpack.c.l.b16 %v1335
        %v1816 = vunpack.c.l.b16 %v1336
        %v1817 = vunpack.c.l.b16 %v1337
        %v1818 = vunpack.c.l.b16 %v1338
        %v1819 = vunpack.c.l.b16 %v1339
        %v1820 = vunpack.c.l.b16 %v1340
        %v1821 = vunpack.c.l.b16 %v1341
        %v1822 = vunpack.c.l.b16 %v1342
        %v1823 = vunpack.c.l.b16 %v1343
        %v1824 = vunpack.c.l.b16 %v1344
        %v1825 = vunpack.c.l.b16 %v1345
        %v1826 = vunpack.c.l.b16 %v1346
        %v1827 = vunpack.c.l.b16 %v1347
        %v1828 = vunpack.c.l.b16 %v1348
        %v1829 = vunpack.c.l.b16 %v1349
        %v1830 = vunpack.c.l.b16 %v1350
        %v1831 = vunpack.c.l.b16 %v1351
        %v1832 = vunpack.c.l.b16 %v1352
        %v1833 = vpack.c.b16 %v1786, %v1785
        %v1834 = vpack.c.b16 %v1788, %v1787
        %v1835 = vpack.c.b16 %v1790, %v1789
        %v1836 = vpack.c.b16 %v1792, %v1791
        %v1837 = vpack.c.b16 %v1794, %v1793
        %v1838 = vpack.c.b16 %v1796, %v1795
        %v1839 = vpack.c.b16 %v1798, %v1797
        %v1840 = vpack.c.b16 %v1800, %v1799
        %v1841 = vpack.c.b16 %v1802, %v1801
        %v1842 = vpack.c.b16 %v1804, %v1803
        %v1843 = vpack.c.b16 %v1806, %v1805
        %v1844 = vpack.c.b16 %v1808, %v1807
        %v1845 = vpack.c.b16 %v1810, %v1809
        %v1846 = vpack.c.b16 %v1812, %v1811
        %v1847 = vpack.c.b16 %v1814, %v1813
        %v1848 = vpack.c.b16 %v1816, %v1815
        %v1849 = vpack.c.b16 %v1818, %v1817
        %v1850 = vpack.c.b16 %v1820, %v1819
        %v1851 = vpack.c.b16 %v1822, %v1821
        %v1852 = vpack.c.b16 %v1824, %v1823
        %v1853 = vpack.c.b16 %v1826, %v1825
        %v1854 = vpack.c.b16 %v1828, %v1827
        %v1855 = vpack.c.b16 %v1830, %v1829
        %v1856 = vpack.c.b16 %v1832, %v1831
        %v1859 = vunpack.c.l.b16 %v1353
        %v1860 = vunpack.c.l.b16 %v1354
        %v1861 = vpack.c.b16 %v1860, %v1859
        %v1863 = vsel %vm1531, %v1833, 0
        %v1866 = vsel %vm1531, %v1834, 0
        %v1869 = vsel %vm1531, %v1835, 0
        %v1872 = vsel %vm1531, %v1836, 0
        %v1875 = vsel %vm1531, %v1837, 0
        %v1878 = vsel %vm1531, %v1838, 0
        %v1881 = vsel %vm1531, %v1839, 0
        %v1884 = vsel %vm1531, %v1840, 0
        %v1887 = vsel %vm1531, %v1841, 0
        %v1890 = vsel %vm1531, %v1842, 0
        %v1893 = vsel %vm1531, %v1843, 0
        %v1896 = vsel %vm1531, %v1844, 0
        %v1899 = vsel %vm1531, %v1845, 0
        %v1902 = vsel %vm1531, %v1846, 0
        %v1905 = vsel %vm1531, %v1847, 0
        %v1908 = vsel %vm1531, %v1848, 0
        %v1911 = vsel %vm1531, %v1849, 0
        %v1914 = vsel %vm1531, %v1850, 0
        %v1917 = vsel %vm1531, %v1851, 0
        %v1920 = vsel %vm1531, %v1852, 0
        %v1923 = vsel %vm1531, %v1853, 0
        %v1926 = vsel %vm1531, %v1854, 0
        %v1929 = vsel %vm1531, %v1855, 0
        %v1932 = vsel %vm1531, %v1856, 0
        %v1935 = vsel %vm1604, %v1861, 0
        %1937 = vmatpush.bf16.msra.mxu0 0
        %1938 = vmatpush.bf16.msra.mxu0 0
        %1939 = vmatpush.bf16.msra.mxu0 0
        %1940 = vmatpush.bf16.msra.mxu0 0
        %1941 = vmatpush.bf16.msra.mxu0 0
        %1942 = vmatpush.bf16.msra.mxu0 0
        %1943 = vmatpush.bf16.msra.mxu0 0
        %1944 = vmatpush.bf16.msra.mxu0 %v1935
        %1945 = vmatmul.bf16.gmra.mxu0 %v1863
        %v1946 = vpop.f32.mrf.mxu0
        %v1947 = vadd.f32 %v1618, %v1946
        %v1948 = vpop.f32.mrf.mxu0
        %v1949 = vadd.f32 %v1620, %v1948
        %1950 = vmatmul.bf16.gmra.mxu0 %v1866
        %v1951 = vpop.f32.mrf.mxu0
        %v1952 = vadd.f32 %v1623, %v1951
        %v1953 = vpop.f32.mrf.mxu0
        %v1954 = vadd.f32 %v1625, %v1953
        %1955 = vmatmul.bf16.gmra.mxu0 %v1869
        %v1956 = vpop.f32.mrf.mxu0
        %v1957 = vadd.f32 %v1628, %v1956
        %v1958 = vpop.f32.mrf.mxu0
        %v1959 = vadd.f32 %v1630, %v1958
        %1960 = vmatmul.bf16.gmra.mxu0 %v1872
        %v1961 = vpop.f32.mrf.mxu0
        %v1962 = vadd.f32 %v1633, %v1961
        %v1963 = vpop.f32.mrf.mxu0
        %v1964 = vadd.f32 %v1635, %v1963
        %1965 = vmatmul.bf16.gmra.mxu0 %v1875
        %v1966 = vpop.f32.mrf.mxu0
        %v1967 = vadd.f32 %v1638, %v1966
        %v1968 = vpop.f32.mrf.mxu0
        %v1969 = vadd.f32 %v1640, %v1968
        %1970 = vmatmul.bf16.gmra.mxu0 %v1878
        %v1971 = vpop.f32.mrf.mxu0
        %v1972 = vadd.f32 %v1643, %v1971
        %v1973 = vpop.f32.mrf.mxu0
        %v1974 = vadd.f32 %v1645, %v1973
        %1975 = vmatmul.bf16.gmra.mxu0 %v1881
        %v1976 = vpop.f32.mrf.mxu0
        %v1977 = vadd.f32 %v1648, %v1976
        %v1978 = vpop.f32.mrf.mxu0
        %v1979 = vadd.f32 %v1650, %v1978
        %1980 = vmatmul.bf16.gmra.mxu0 %v1884
        %v1981 = vpop.f32.mrf.mxu0
        %v1982 = vadd.f32 %v1653, %v1981
        %v1983 = vpop.f32.mrf.mxu0
        %v1984 = vadd.f32 %v1655, %v1983
        %1985 = vmatmul.bf16.gmra.mxu0 %v1887
        %v1986 = vpop.f32.mrf.mxu0
        %v1987 = vadd.f32 %v1658, %v1986
        %v1988 = vpop.f32.mrf.mxu0
        %v1989 = vadd.f32 %v1660, %v1988
        %1990 = vmatmul.bf16.gmra.mxu0 %v1890
        %v1991 = vpop.f32.mrf.mxu0
        %v1992 = vadd.f32 %v1663, %v1991
        %v1993 = vpop.f32.mrf.mxu0
        %v1994 = vadd.f32 %v1665, %v1993
        %1995 = vmatmul.bf16.gmra.mxu0 %v1893
        %v1996 = vpop.f32.mrf.mxu0
        %v1997 = vadd.f32 %v1668, %v1996
        %v1998 = vpop.f32.mrf.mxu0
        %v1999 = vadd.f32 %v1670, %v1998
        %2000 = vmatmul.bf16.gmra.mxu0 %v1896
        %v2001 = vpop.f32.mrf.mxu0
        %v2002 = vadd.f32 %v1673, %v2001
        %v2003 = vpop.f32.mrf.mxu0
        %v2004 = vadd.f32 %v1675, %v2003
        %2005 = vmatmul.bf16.gmra.mxu0 %v1899
        %v2006 = vpop.f32.mrf.mxu0
        %v2007 = vadd.f32 %v1678, %v2006
        %v2008 = vpop.f32.mrf.mxu0
        %v2009 = vadd.f32 %v1680, %v2008
        %2010 = vmatmul.bf16.gmra.mxu0 %v1902
        %v2011 = vpop.f32.mrf.mxu0
        %v2012 = vadd.f32 %v1683, %v2011
        %v2013 = vpop.f32.mrf.mxu0
        %v2014 = vadd.f32 %v1685, %v2013
        %2015 = vmatmul.bf16.gmra.mxu0 %v1905
        %v2016 = vpop.f32.mrf.mxu0
        %v2017 = vadd.f32 %v1688, %v2016
        %v2018 = vpop.f32.mrf.mxu0
        %v2019 = vadd.f32 %v1690, %v2018
        %2020 = vmatmul.bf16.gmra.mxu0 %v1908
        %v2021 = vpop.f32.mrf.mxu0
        %v2022 = vadd.f32 %v1693, %v2021
        %v2023 = vpop.f32.mrf.mxu0
        %v2024 = vadd.f32 %v1695, %v2023
        %2025 = vmatmul.bf16.gmra.mxu0 %v1911
        %v2026 = vpop.f32.mrf.mxu0
        %v2027 = vadd.f32 %v1698, %v2026
        %v2028 = vpop.f32.mrf.mxu0
        %v2029 = vadd.f32 %v1700, %v2028
        %2030 = vmatmul.bf16.gmra.mxu0 %v1914
        %v2031 = vpop.f32.mrf.mxu0
        %v2032 = vadd.f32 %v1703, %v2031
        %v2033 = vpop.f32.mrf.mxu0
        %v2034 = vadd.f32 %v1705, %v2033
        %2035 = vmatmul.bf16.gmra.mxu0 %v1917
        %v2036 = vpop.f32.mrf.mxu0
        %v2037 = vadd.f32 %v1708, %v2036
        %v2038 = vpop.f32.mrf.mxu0
        %v2039 = vadd.f32 %v1710, %v2038
        %2040 = vmatmul.bf16.gmra.mxu0 %v1920
        %v2041 = vpop.f32.mrf.mxu0
        %v2042 = vadd.f32 %v1713, %v2041
        %v2043 = vpop.f32.mrf.mxu0
        %v2044 = vadd.f32 %v1715, %v2043
        %2045 = vmatmul.bf16.gmra.mxu0 %v1923
        %v2046 = vpop.f32.mrf.mxu0
        %v2047 = vadd.f32 %v1718, %v2046
        %v2048 = vpop.f32.mrf.mxu0
        %v2049 = vadd.f32 %v1720, %v2048
        %2050 = vmatmul.bf16.gmra.mxu0 %v1926
        %v2051 = vpop.f32.mrf.mxu0
        %v2052 = vadd.f32 %v1723, %v2051
        %v2053 = vpop.f32.mrf.mxu0
        %v2054 = vadd.f32 %v1725, %v2053
        %2055 = vmatmul.bf16.gmra.mxu0 %v1929
        %v2056 = vpop.f32.mrf.mxu0
        %v2057 = vadd.f32 %v1728, %v2056
        %v2058 = vpop.f32.mrf.mxu0
        %v2059 = vadd.f32 %v1730, %v2058
        %2060 = vmatmul.bf16.gmra.mxu0 %v1932
        %v2061 = vpop.f32.mrf.mxu0
        %v2062 = vadd.f32 %v1733, %v2061
        %v2063 = vpop.f32.mrf.mxu0
        %v2064 = vadd.f32 %v1735, %v2063
        %2065 = vdwg.mxu0
        %s2066 = scalar_lea.vmem [#allocation2], 24
        %v2067 = vld [vmem:[%s2066] sm:$0xf]
        %v2068 = vld [vmem:[%s2066 + $0x4] sm:$0xf]
        %v2069 = vld [vmem:[%s2066 + $0x8] sm:$0xf]
        %v2070 = vld [vmem:[%s2066 + $0xc] sm:$0xf]
        %v2071 = vld [vmem:[%s2066 + $0x10] sm:$0xf]
        %v2072 = vld [vmem:[%s2066 + $0x14] sm:$0xf]
        %v2073 = vld [vmem:[%s2066 + $0x18] sm:$0xf]
        %v2074 = vld [vmem:[%s2066 + $0x1c] sm:$0xf]
        %v2075 = vld [vmem:[%s2066 + $0x20] sm:$0xf]
        %v2076 = vld [vmem:[%s2066 + $0x24] sm:$0xf]
        %v2077 = vld [vmem:[%s2066 + $0x28] sm:$0xf]
        %v2078 = vld [vmem:[%s2066 + $0x2c] sm:$0xf]
        %v2079 = vld [vmem:[%s2066 + $0x30] sm:$0xf]
        %v2080 = vld [vmem:[%s2066 + $0x34] sm:$0xf]
        %v2081 = vld [vmem:[%s2066 + $0x38] sm:$0xf]
        %v2082 = vld [vmem:[%s2066 + $0x3c] sm:$0xf]
        %v2083 = vld [vmem:[%s2066 + $0x40] sm:$0xf]
        %v2084 = vld [vmem:[%s2066 + $0x44] sm:$0xf]
        %v2085 = vld [vmem:[%s2066 + $0x48] sm:$0xf]
        %v2086 = vld [vmem:[%s2066 + $0x4c] sm:$0xf]
        %v2087 = vld [vmem:[%s2066 + $0x50] sm:$0xf]
        %v2088 = vld [vmem:[%s2066 + $0x54] sm:$0xf]
        %v2089 = vld [vmem:[%s2066 + $0x58] sm:$0xf]
        %v2090 = vld [vmem:[%s2066 + $0x5c] sm:$0xf]
        %v2091 = vld [vmem:[%s2066 + $0x60] sm:$0xf]
        %v2092 = vld [vmem:[%s2066 + $0x64] sm:$0xf]
        %v2093 = vld [vmem:[%s2066 + $0x68] sm:$0xf]
        %v2094 = vld [vmem:[%s2066 + $0x6c] sm:$0xf]
        %v2095 = vld [vmem:[%s2066 + $0x70] sm:$0xf]
        %v2096 = vld [vmem:[%s2066 + $0x74] sm:$0xf]
        %v2097 = vld [vmem:[%s2066 + $0x78] sm:$0xf]
        %v2098 = vld [vmem:[%s2066 + $0x7c] sm:$0xf]
        %v2099 = vld [vmem:[%s2066 + $0x80] sm:$0xf]
        %v2100 = vld [vmem:[%s2066 + $0x84] sm:$0xf]
        %v2101 = vld [vmem:[%s2066 + $0x88] sm:$0xf]
        %v2102 = vld [vmem:[%s2066 + $0x8c] sm:$0xf]
        %v2103 = vld [vmem:[%s2066 + $0x90] sm:$0xf]
        %v2104 = vld [vmem:[%s2066 + $0x94] sm:$0xf]
        %v2105 = vld [vmem:[%s2066 + $0x98] sm:$0xf]
        %v2106 = vld [vmem:[%s2066 + $0x9c] sm:$0xf]
        %v2107 = vld [vmem:[%s2066 + $0xa0] sm:$0xf]
        %v2108 = vld [vmem:[%s2066 + $0xa4] sm:$0xf]
        %v2109 = vld [vmem:[%s2066 + $0xa8] sm:$0xf]
        %v2110 = vld [vmem:[%s2066 + $0xac] sm:$0xf]
        %v2111 = vld [vmem:[%s2066 + $0xb0] sm:$0xf]
        %v2112 = vld [vmem:[%s2066 + $0xb4] sm:$0xf]
        %v2113 = vld [vmem:[%s2066 + $0xb8] sm:$0xf]
        %v2114 = vld [vmem:[%s2066 + $0xbc] sm:$0xf]
        %s2115 = scalar_lea.vmem %s1, 16
        %v2116 = vld [vmem:[%s2115] sm:$0xf]
        %v2117 = vld [vmem:[%s2115 + $0x4] sm:$0x3]
        %v2166 = vunpack.c.l.b16 %v2067
        %v2167 = vunpack.c.l.b16 %v2068
        %v2168 = vunpack.c.l.b16 %v2069
        %v2169 = vunpack.c.l.b16 %v2070
        %v2170 = vunpack.c.l.b16 %v2071
        %v2171 = vunpack.c.l.b16 %v2072
        %v2172 = vunpack.c.l.b16 %v2073
        %v2173 = vunpack.c.l.b16 %v2074
        %v2174 = vunpack.c.l.b16 %v2075
        %v2175 = vunpack.c.l.b16 %v2076
        %v2176 = vunpack.c.l.b16 %v2077
        %v2177 = vunpack.c.l.b16 %v2078
        %v2178 = vunpack.c.l.b16 %v2079
        %v2179 = vunpack.c.l.b16 %v2080
        %v2180 = vunpack.c.l.b16 %v2081
        %v2181 = vunpack.c.l.b16 %v2082
        %v2182 = vunpack.c.l.b16 %v2083
        %v2183 = vunpack.c.l.b16 %v2084
        %v2184 = vunpack.c.l.b16 %v2085
        %v2185 = vunpack.c.l.b16 %v2086
        %v2186 = vunpack.c.l.b16 %v2087
        %v2187 = vunpack.c.l.b16 %v2088
        %v2188 = vunpack.c.l.b16 %v2089
        %v2189 = vunpack.c.l.b16 %v2090
        %v2190 = vunpack.c.l.b16 %v2091
        %v2191 = vunpack.c.l.b16 %v2092
        %v2192 = vunpack.c.l.b16 %v2093
        %v2193 = vunpack.c.l.b16 %v2094
        %v2194 = vunpack.c.l.b16 %v2095
        %v2195 = vunpack.c.l.b16 %v2096
        %v2196 = vunpack.c.l.b16 %v2097
        %v2197 = vunpack.c.l.b16 %v2098
        %v2198 = vunpack.c.l.b16 %v2099
        %v2199 = vunpack.c.l.b16 %v2100
        %v2200 = vunpack.c.l.b16 %v2101
        %v2201 = vunpack.c.l.b16 %v2102
        %v2202 = vunpack.c.l.b16 %v2103
        %v2203 = vunpack.c.l.b16 %v2104
        %v2204 = vunpack.c.l.b16 %v2105
        %v2205 = vunpack.c.l.b16 %v2106
        %v2206 = vunpack.c.l.b16 %v2107
        %v2207 = vunpack.c.l.b16 %v2108
        %v2208 = vunpack.c.l.b16 %v2109
        %v2209 = vunpack.c.l.b16 %v2110
        %v2210 = vunpack.c.l.b16 %v2111
        %v2211 = vunpack.c.l.b16 %v2112
        %v2212 = vunpack.c.l.b16 %v2113
        %v2213 = vunpack.c.l.b16 %v2114
        %v2214 = vpack.c.b16 %v2167, %v2166
        %v2215 = vpack.c.b16 %v2169, %v2168
        %v2216 = vpack.c.b16 %v2171, %v2170
        %v2217 = vpack.c.b16 %v2173, %v2172
        %v2218 = vpack.c.b16 %v2175, %v2174
        %v2219 = vpack.c.b16 %v2177, %v2176
        %v2220 = vpack.c.b16 %v2179, %v2178
        %v2221 = vpack.c.b16 %v2181, %v2180
        %v2222 = vpack.c.b16 %v2183, %v2182
        %v2223 = vpack.c.b16 %v2185, %v2184
        %v2224 = vpack.c.b16 %v2187, %v2186
        %v2225 = vpack.c.b16 %v2189, %v2188
        %v2226 = vpack.c.b16 %v2191, %v2190
        %v2227 = vpack.c.b16 %v2193, %v2192
        %v2228 = vpack.c.b16 %v2195, %v2194
        %v2229 = vpack.c.b16 %v2197, %v2196
        %v2230 = vpack.c.b16 %v2199, %v2198
        %v2231 = vpack.c.b16 %v2201, %v2200
        %v2232 = vpack.c.b16 %v2203, %v2202
        %v2233 = vpack.c.b16 %v2205, %v2204
        %v2234 = vpack.c.b16 %v2207, %v2206
        %v2235 = vpack.c.b16 %v2209, %v2208
        %v2236 = vpack.c.b16 %v2211, %v2210
        %v2237 = vpack.c.b16 %v2213, %v2212
        %v2240 = vunpack.c.l.b16 %v2116
        %v2241 = vunpack.c.l.b16 %v2117
        %v2242 = vpack.c.b16 %v2241, %v2240
        %v2244 = vsel %vm1531, %v2214, 0
        %v2247 = vsel %vm1531, %v2215, 0
        %v2250 = vsel %vm1531, %v2216, 0
        %v2253 = vsel %vm1531, %v2217, 0
        %v2256 = vsel %vm1531, %v2218, 0
        %v2259 = vsel %vm1531, %v2219, 0
        %v2262 = vsel %vm1531, %v2220, 0
        %v2265 = vsel %vm1531, %v2221, 0
        %v2268 = vsel %vm1531, %v2222, 0
        %v2271 = vsel %vm1531, %v2223, 0
        %v2274 = vsel %vm1531, %v2224, 0
        %v2277 = vsel %vm1531, %v2225, 0
        %v2280 = vsel %vm1531, %v2226, 0
        %v2283 = vsel %vm1531, %v2227, 0
        %v2286 = vsel %vm1531, %v2228, 0
        %v2289 = vsel %vm1531, %v2229, 0
        %v2292 = vsel %vm1531, %v2230, 0
        %v2295 = vsel %vm1531, %v2231, 0
        %v2298 = vsel %vm1531, %v2232, 0
        %v2301 = vsel %vm1531, %v2233, 0
        %v2304 = vsel %vm1531, %v2234, 0
        %v2307 = vsel %vm1531, %v2235, 0
        %v2310 = vsel %vm1531, %v2236, 0
        %v2313 = vsel %vm1531, %v2237, 0
        %v2316 = vsel %vm1604, %v2242, 0
        %2318 = vmatpush.bf16.msra.mxu0 0
        %2319 = vmatpush.bf16.msra.mxu0 0
        %2320 = vmatpush.bf16.msra.mxu0 0
        %2321 = vmatpush.bf16.msra.mxu0 0
        %2322 = vmatpush.bf16.msra.mxu0 0
        %2323 = vmatpush.bf16.msra.mxu0 0
        %2324 = vmatpush.bf16.msra.mxu0 0
        %2325 = vmatpush.bf16.msra.mxu0 %v2316
        %2326 = vmatmul.bf16.gmra.mxu0 %v2244
        %v2327 = vpop.f32.mrf.mxu0
        %v2328 = vadd.f32 0.0, %v2327
        %v2329 = vpop.f32.mrf.mxu0
        %v2330 = vadd.f32 0.0, %v2329
        %2331 = vmatmul.bf16.gmra.mxu0 %v2247
        %v2332 = vpop.f32.mrf.mxu0
        %v2333 = vadd.f32 0.0, %v2332
        %v2334 = vpop.f32.mrf.mxu0
        %v2335 = vadd.f32 0.0, %v2334
        %2336 = vmatmul.bf16.gmra.mxu0 %v2250
        %v2337 = vpop.f32.mrf.mxu0
        %v2338 = vadd.f32 0.0, %v2337
        %v2339 = vpop.f32.mrf.mxu0
        %v2340 = vadd.f32 0.0, %v2339
        %2341 = vmatmul.bf16.gmra.mxu0 %v2253
        %v2342 = vpop.f32.mrf.mxu0
        %v2343 = vadd.f32 0.0, %v2342
        %v2344 = vpop.f32.mrf.mxu0
        %v2345 = vadd.f32 0.0, %v2344
        %2346 = vmatmul.bf16.gmra.mxu0 %v2256
        %v2347 = vpop.f32.mrf.mxu0
        %v2348 = vadd.f32 0.0, %v2347
        %v2349 = vpop.f32.mrf.mxu0
        %v2350 = vadd.f32 0.0, %v2349
        %2351 = vmatmul.bf16.gmra.mxu0 %v2259
        %v2352 = vpop.f32.mrf.mxu0
        %v2353 = vadd.f32 0.0, %v2352
        %v2354 = vpop.f32.mrf.mxu0
        %v2355 = vadd.f32 0.0, %v2354
        %2356 = vmatmul.bf16.gmra.mxu0 %v2262
        %v2357 = vpop.f32.mrf.mxu0
        %v2358 = vadd.f32 0.0, %v2357
        %v2359 = vpop.f32.mrf.mxu0
        %v2360 = vadd.f32 0.0, %v2359
        %2361 = vmatmul.bf16.gmra.mxu0 %v2265
        %v2362 = vpop.f32.mrf.mxu0
        %v2363 = vadd.f32 0.0, %v2362
        %v2364 = vpop.f32.mrf.mxu0
        %v2365 = vadd.f32 0.0, %v2364
        %2366 = vmatmul.bf16.gmra.mxu0 %v2268
        %v2367 = vpop.f32.mrf.mxu0
        %v2368 = vadd.f32 0.0, %v2367
        %v2369 = vpop.f32.mrf.mxu0
        %v2370 = vadd.f32 0.0, %v2369
        %2371 = vmatmul.bf16.gmra.mxu0 %v2271
        %v2372 = vpop.f32.mrf.mxu0
        %v2373 = vadd.f32 0.0, %v2372
        %v2374 = vpop.f32.mrf.mxu0
        %v2375 = vadd.f32 0.0, %v2374
        %2376 = vmatmul.bf16.gmra.mxu0 %v2274
        %v2377 = vpop.f32.mrf.mxu0
        %v2378 = vadd.f32 0.0, %v2377
        %v2379 = vpop.f32.mrf.mxu0
        %v2380 = vadd.f32 0.0, %v2379
        %2381 = vmatmul.bf16.gmra.mxu0 %v2277
        %v2382 = vpop.f32.mrf.mxu0
        %v2383 = vadd.f32 0.0, %v2382
        %v2384 = vpop.f32.mrf.mxu0
        %v2385 = vadd.f32 0.0, %v2384
        %2386 = vmatmul.bf16.gmra.mxu0 %v2280
        %v2387 = vpop.f32.mrf.mxu0
        %v2388 = vadd.f32 0.0, %v2387
        %v2389 = vpop.f32.mrf.mxu0
        %v2390 = vadd.f32 0.0, %v2389
        %2391 = vmatmul.bf16.gmra.mxu0 %v2283
        %v2392 = vpop.f32.mrf.mxu0
        %v2393 = vadd.f32 0.0, %v2392
        %v2394 = vpop.f32.mrf.mxu0
        %v2395 = vadd.f32 0.0, %v2394
        %2396 = vmatmul.bf16.gmra.mxu0 %v2286
        %v2397 = vpop.f32.mrf.mxu0
        %v2398 = vadd.f32 0.0, %v2397
        %v2399 = vpop.f32.mrf.mxu0
        %v2400 = vadd.f32 0.0, %v2399
        %2401 = vmatmul.bf16.gmra.mxu0 %v2289
        %v2402 = vpop.f32.mrf.mxu0
        %v2403 = vadd.f32 0.0, %v2402
        %v2404 = vpop.f32.mrf.mxu0
        %v2405 = vadd.f32 0.0, %v2404
        %2406 = vmatmul.bf16.gmra.mxu0 %v2292
        %v2407 = vpop.f32.mrf.mxu0
        %v2408 = vadd.f32 0.0, %v2407
        %v2409 = vpop.f32.mrf.mxu0
        %v2410 = vadd.f32 0.0, %v2409
        %2411 = vmatmul.bf16.gmra.mxu0 %v2295
        %v2412 = vpop.f32.mrf.mxu0
        %v2413 = vadd.f32 0.0, %v2412
        %v2414 = vpop.f32.mrf.mxu0
        %v2415 = vadd.f32 0.0, %v2414
        %2416 = vmatmul.bf16.gmra.mxu0 %v2298
        %v2417 = vpop.f32.mrf.mxu0
        %v2418 = vadd.f32 0.0, %v2417
        %v2419 = vpop.f32.mrf.mxu0
        %v2420 = vadd.f32 0.0, %v2419
        %2421 = vmatmul.bf16.gmra.mxu0 %v2301
        %v2422 = vpop.f32.mrf.mxu0
        %v2423 = vadd.f32 0.0, %v2422
        %v2424 = vpop.f32.mrf.mxu0
        %v2425 = vadd.f32 0.0, %v2424
        %2426 = vmatmul.bf16.gmra.mxu0 %v2304
        %v2427 = vpop.f32.mrf.mxu0
        %v2428 = vadd.f32 0.0, %v2427
        %v2429 = vpop.f32.mrf.mxu0
        %v2430 = vadd.f32 0.0, %v2429
        %2431 = vmatmul.bf16.gmra.mxu0 %v2307
        %v2432 = vpop.f32.mrf.mxu0
        %v2433 = vadd.f32 0.0, %v2432
        %v2434 = vpop.f32.mrf.mxu0
        %v2435 = vadd.f32 0.0, %v2434
        %2436 = vmatmul.bf16.gmra.mxu0 %v2310
        %v2437 = vpop.f32.mrf.mxu0
        %v2438 = vadd.f32 0.0, %v2437
        %v2439 = vpop.f32.mrf.mxu0
        %v2440 = vadd.f32 0.0, %v2439
        %2441 = vmatmul.bf16.gmra.mxu0 %v2313
        %v2442 = vpop.f32.mrf.mxu0
        %v2443 = vadd.f32 0.0, %v2442
        %v2444 = vpop.f32.mrf.mxu0
        %v2445 = vadd.f32 0.0, %v2444
        %2446 = vdwg.mxu0
        %v2447 = vadd.f32 %v1947, %v2328
        %v2448 = vadd.f32 %v1949, %v2330
        %v2449 = vadd.f32 %v1952, %v2333
        %v2450 = vadd.f32 %v1954, %v2335
        %v2451 = vadd.f32 %v1957, %v2338
        %v2452 = vadd.f32 %v1959, %v2340
        %v2453 = vadd.f32 %v1962, %v2343
        %v2454 = vadd.f32 %v1964, %v2345
        %v2455 = vadd.f32 %v1967, %v2348
        %v2456 = vadd.f32 %v1969, %v2350
        %v2457 = vadd.f32 %v1972, %v2353
        %v2458 = vadd.f32 %v1974, %v2355
        %v2459 = vadd.f32 %v1977, %v2358
        %v2460 = vadd.f32 %v1979, %v2360
        %v2461 = vadd.f32 %v1982, %v2363
        %v2462 = vadd.f32 %v1984, %v2365
        %v2463 = vadd.f32 %v1987, %v2368
        %v2464 = vadd.f32 %v1989, %v2370
        %v2465 = vadd.f32 %v1992, %v2373
        %v2466 = vadd.f32 %v1994, %v2375
        %v2467 = vadd.f32 %v1997, %v2378
        %v2468 = vadd.f32 %v1999, %v2380
        %v2469 = vadd.f32 %v2002, %v2383
        %v2470 = vadd.f32 %v2004, %v2385
        %v2471 = vadd.f32 %v2007, %v2388
        %v2472 = vadd.f32 %v2009, %v2390
        %v2473 = vadd.f32 %v2012, %v2393
        %v2474 = vadd.f32 %v2014, %v2395
        %v2475 = vadd.f32 %v2017, %v2398
        %v2476 = vadd.f32 %v2019, %v2400
        %v2477 = vadd.f32 %v2022, %v2403
        %v2478 = vadd.f32 %v2024, %v2405
        %v2479 = vadd.f32 %v2027, %v2408
        %v2480 = vadd.f32 %v2029, %v2410
        %v2481 = vadd.f32 %v2032, %v2413
        %v2482 = vadd.f32 %v2034, %v2415
        %v2483 = vadd.f32 %v2037, %v2418
        %v2484 = vadd.f32 %v2039, %v2420
        %v2485 = vadd.f32 %v2042, %v2423
        %v2486 = vadd.f32 %v2044, %v2425
        %v2487 = vadd.f32 %v2047, %v2428
        %v2488 = vadd.f32 %v2049, %v2430
        %v2489 = vadd.f32 %v2052, %v2433
        %v2490 = vadd.f32 %v2054, %v2435
        %v2491 = vadd.f32 %v2057, %v2438
        %v2492 = vadd.f32 %v2059, %v2440
        %v2493 = vadd.f32 %v2062, %v2443
        %v2494 = vadd.f32 %v2064, %v2445
        %v2495 = vld [vmem:[%s2] sm:$0x1]
        %v2497 = vperm.slane %v2495, 0
        %v2499 = vmul.f32 %v2447, %v2497
        %v2500 = vmul.f32 %v2448, %v2497
        %v2501 = vmul.f32 %v2449, %v2497
        %v2502 = vmul.f32 %v2450, %v2497
        %v2503 = vmul.f32 %v2451, %v2497
        %v2504 = vmul.f32 %v2452, %v2497
        %v2505 = vmul.f32 %v2453, %v2497
        %v2506 = vmul.f32 %v2454, %v2497
        %v2507 = vmul.f32 %v2455, %v2497
        %v2508 = vmul.f32 %v2456, %v2497
        %v2509 = vmul.f32 %v2457, %v2497
        %v2510 = vmul.f32 %v2458, %v2497
        %v2511 = vmul.f32 %v2459, %v2497
        %v2512 = vmul.f32 %v2460, %v2497
        %v2513 = vmul.f32 %v2461, %v2497
        %v2514 = vmul.f32 %v2462, %v2497
        %v2515 = vmul.f32 %v2463, %v2497
        %v2516 = vmul.f32 %v2464, %v2497
        %v2517 = vmul.f32 %v2465, %v2497
        %v2518 = vmul.f32 %v2466, %v2497
        %v2519 = vmul.f32 %v2467, %v2497
        %v2520 = vmul.f32 %v2468, %v2497
        %v2521 = vmul.f32 %v2469, %v2497
        %v2522 = vmul.f32 %v2470, %v2497
        %v2523 = vmul.f32 %v2471, %v2497
        %v2524 = vmul.f32 %v2472, %v2497
        %v2525 = vmul.f32 %v2473, %v2497
        %v2526 = vmul.f32 %v2474, %v2497
        %v2527 = vmul.f32 %v2475, %v2497
        %v2528 = vmul.f32 %v2476, %v2497
        %v2529 = vmul.f32 %v2477, %v2497
        %v2530 = vmul.f32 %v2478, %v2497
        %v2531 = vmul.f32 %v2479, %v2497
        %v2532 = vmul.f32 %v2480, %v2497
        %v2533 = vmul.f32 %v2481, %v2497
        %v2534 = vmul.f32 %v2482, %v2497
        %v2535 = vmul.f32 %v2483, %v2497
        %v2536 = vmul.f32 %v2484, %v2497
        %v2537 = vmul.f32 %v2485, %v2497
        %v2538 = vmul.f32 %v2486, %v2497
        %v2539 = vmul.f32 %v2487, %v2497
        %v2540 = vmul.f32 %v2488, %v2497
        %v2541 = vmul.f32 %v2489, %v2497
        %v2542 = vmul.f32 %v2490, %v2497
        %v2543 = vmul.f32 %v2491, %v2497
        %v2544 = vmul.f32 %v2492, %v2497
        %v2545 = vmul.f32 %v2493, %v2497
        %v2546 = vmul.f32 %v2494, %v2497
        %v2547 = vld [vmem:[%s3] sm:$0x1]
        %v2549 = vperm.slane %v2547, 0
        %v2551 = vadd.f32 %v2499, %v2549
        %v2552 = vadd.f32 %v2500, %v2549
        %v2553 = vadd.f32 %v2501, %v2549
        %v2554 = vadd.f32 %v2502, %v2549
        %v2555 = vadd.f32 %v2503, %v2549
        %v2556 = vadd.f32 %v2504, %v2549
        %v2557 = vadd.f32 %v2505, %v2549
        %v2558 = vadd.f32 %v2506, %v2549
        %v2559 = vadd.f32 %v2507, %v2549
        %v2560 = vadd.f32 %v2508, %v2549
        %v2561 = vadd.f32 %v2509, %v2549
        %v2562 = vadd.f32 %v2510, %v2549
        %v2563 = vadd.f32 %v2511, %v2549
        %v2564 = vadd.f32 %v2512, %v2549
        %v2565 = vadd.f32 %v2513, %v2549
        %v2566 = vadd.f32 %v2514, %v2549
        %v2567 = vadd.f32 %v2515, %v2549
        %v2568 = vadd.f32 %v2516, %v2549
        %v2569 = vadd.f32 %v2517, %v2549
        %v2570 = vadd.f32 %v2518, %v2549
        %v2571 = vadd.f32 %v2519, %v2549
        %v2572 = vadd.f32 %v2520, %v2549
        %v2573 = vadd.f32 %v2521, %v2549
        %v2574 = vadd.f32 %v2522, %v2549
        %v2575 = vadd.f32 %v2523, %v2549
        %v2576 = vadd.f32 %v2524, %v2549
        %v2577 = vadd.f32 %v2525, %v2549
        %v2578 = vadd.f32 %v2526, %v2549
        %v2579 = vadd.f32 %v2527, %v2549
        %v2580 = vadd.f32 %v2528, %v2549
        %v2581 = vadd.f32 %v2529, %v2549
        %v2582 = vadd.f32 %v2530, %v2549
        %v2583 = vadd.f32 %v2531, %v2549
        %v2584 = vadd.f32 %v2532, %v2549
        %v2585 = vadd.f32 %v2533, %v2549
        %v2586 = vadd.f32 %v2534, %v2549
        %v2587 = vadd.f32 %v2535, %v2549
        %v2588 = vadd.f32 %v2536, %v2549
        %v2589 = vadd.f32 %v2537, %v2549
        %v2590 = vadd.f32 %v2538, %v2549
        %v2591 = vadd.f32 %v2539, %v2549
        %v2592 = vadd.f32 %v2540, %v2549
        %v2593 = vadd.f32 %v2541, %v2549
        %v2594 = vadd.f32 %v2542, %v2549
        %v2595 = vadd.f32 %v2543, %v2549
        %v2596 = vadd.f32 %v2544, %v2549
        %v2597 = vadd.f32 %v2545, %v2549
        %v2598 = vadd.f32 %v2546, %v2549
        %vm2599 = vcmp.gt.f32.partialorder %v2551, 0.0
        %vm2600 = vcmp.gt.f32.partialorder %v2552, 0.0
        %vm2601 = vcmp.gt.f32.partialorder %v2553, 0.0
        %vm2602 = vcmp.gt.f32.partialorder %v2554, 0.0
        %vm2603 = vcmp.gt.f32.partialorder %v2555, 0.0
        %vm2604 = vcmp.gt.f32.partialorder %v2556, 0.0
        %vm2605 = vcmp.gt.f32.partialorder %v2557, 0.0
        %vm2606 = vcmp.gt.f32.partialorder %v2558, 0.0
        %vm2607 = vcmp.gt.f32.partialorder %v2559, 0.0
        %vm2608 = vcmp.gt.f32.partialorder %v2560, 0.0
        %vm2609 = vcmp.gt.f32.partialorder %v2561, 0.0
        %vm2610 = vcmp.gt.f32.partialorder %v2562, 0.0
        %vm2611 = vcmp.gt.f32.partialorder %v2563, 0.0
        %vm2612 = vcmp.gt.f32.partialorder %v2564, 0.0
        %vm2613 = vcmp.gt.f32.partialorder %v2565, 0.0
        %vm2614 = vcmp.gt.f32.partialorder %v2566, 0.0
        %vm2615 = vcmp.gt.f32.partialorder %v2567, 0.0
        %vm2616 = vcmp.gt.f32.partialorder %v2568, 0.0
        %vm2617 = vcmp.gt.f32.partialorder %v2569, 0.0
        %vm2618 = vcmp.gt.f32.partialorder %v2570, 0.0
        %vm2619 = vcmp.gt.f32.partialorder %v2571, 0.0
        %vm2620 = vcmp.gt.f32.partialorder %v2572, 0.0
        %vm2621 = vcmp.gt.f32.partialorder %v2573, 0.0
        %vm2622 = vcmp.gt.f32.partialorder %v2574, 0.0
        %vm2623 = vcmp.gt.f32.partialorder %v2575, 0.0
        %vm2624 = vcmp.gt.f32.partialorder %v2576, 0.0
        %vm2625 = vcmp.gt.f32.partialorder %v2577, 0.0
        %vm2626 = vcmp.gt.f32.partialorder %v2578, 0.0
        %vm2627 = vcmp.gt.f32.partialorder %v2579, 0.0
        %vm2628 = vcmp.gt.f32.partialorder %v2580, 0.0
        %vm2629 = vcmp.gt.f32.partialorder %v2581, 0.0
        %vm2630 = vcmp.gt.f32.partialorder %v2582, 0.0
        %vm2631 = vcmp.gt.f32.partialorder %v2583, 0.0
        %vm2632 = vcmp.gt.f32.partialorder %v2584, 0.0
        %vm2633 = vcmp.gt.f32.partialorder %v2585, 0.0
        %vm2634 = vcmp.gt.f32.partialorder %v2586, 0.0
        %vm2635 = vcmp.gt.f32.partialorder %v2587, 0.0
        %vm2636 = vcmp.gt.f32.partialorder %v2588, 0.0
        %vm2637 = vcmp.gt.f32.partialorder %v2589, 0.0
        %vm2638 = vcmp.gt.f32.partialorder %v2590, 0.0
        %vm2639 = vcmp.gt.f32.partialorder %v2591, 0.0
        %vm2640 = vcmp.gt.f32.partialorder %v2592, 0.0
        %vm2641 = vcmp.gt.f32.partialorder %v2593, 0.0
        %vm2642 = vcmp.gt.f32.partialorder %v2594, 0.0
        %vm2643 = vcmp.gt.f32.partialorder %v2595, 0.0
        %vm2644 = vcmp.gt.f32.partialorder %v2596, 0.0
        %vm2645 = vcmp.gt.f32.partialorder %v2597, 0.0
        %vm2646 = vcmp.gt.f32.partialorder %v2598, 0.0
        %v2647 = vmul.f32 %v2551, 0.1
        %v2648 = vmul.f32 %v2552, 0.1
        %v2649 = vmul.f32 %v2553, 0.1
        %v2650 = vmul.f32 %v2554, 0.1
        %v2651 = vmul.f32 %v2555, 0.1
        %v2652 = vmul.f32 %v2556, 0.1
        %v2653 = vmul.f32 %v2557, 0.1
        %v2654 = vmul.f32 %v2558, 0.1
        %v2655 = vmul.f32 %v2559, 0.1
        %v2656 = vmul.f32 %v2560, 0.1
        %v2657 = vmul.f32 %v2561, 0.1
        %v2658 = vmul.f32 %v2562, 0.1
        %v2659 = vmul.f32 %v2563, 0.1
        %v2660 = vmul.f32 %v2564, 0.1
        %v2661 = vmul.f32 %v2565, 0.1
        %v2662 = vmul.f32 %v2566, 0.1
        %v2663 = vmul.f32 %v2567, 0.1
        %v2664 = vmul.f32 %v2568, 0.1
        %v2665 = vmul.f32 %v2569, 0.1
        %v2666 = vmul.f32 %v2570, 0.1
        %v2667 = vmul.f32 %v2571, 0.1
        %v2668 = vmul.f32 %v2572, 0.1
        %v2669 = vmul.f32 %v2573, 0.1
        %v2670 = vmul.f32 %v2574, 0.1
        %v2671 = vmul.f32 %v2575, 0.1
        %v2672 = vmul.f32 %v2576, 0.1
        %v2673 = vmul.f32 %v2577, 0.1
        %v2674 = vmul.f32 %v2578, 0.1
        %v2675 = vmul.f32 %v2579, 0.1
        %v2676 = vmul.f32 %v2580, 0.1
        %v2677 = vmul.f32 %v2581, 0.1
        %v2678 = vmul.f32 %v2582, 0.1
        %v2679 = vmul.f32 %v2583, 0.1
        %v2680 = vmul.f32 %v2584, 0.1
        %v2681 = vmul.f32 %v2585, 0.1
        %v2682 = vmul.f32 %v2586, 0.1
        %v2683 = vmul.f32 %v2587, 0.1
        %v2684 = vmul.f32 %v2588, 0.1
        %v2685 = vmul.f32 %v2589, 0.1
        %v2686 = vmul.f32 %v2590, 0.1
        %v2687 = vmul.f32 %v2591, 0.1
        %v2688 = vmul.f32 %v2592, 0.1
        %v2689 = vmul.f32 %v2593, 0.1
        %v2690 = vmul.f32 %v2594, 0.1
        %v2691 = vmul.f32 %v2595, 0.1
        %v2692 = vmul.f32 %v2596, 0.1
        %v2693 = vmul.f32 %v2597, 0.1
        %v2694 = vmul.f32 %v2598, 0.1
        %v2695 = vsel %vm2599, %v2551, %v2647
        %v2696 = vsel %vm2600, %v2552, %v2648
        %v2697 = vsel %vm2601, %v2553, %v2649
        %v2698 = vsel %vm2602, %v2554, %v2650
        %v2699 = vsel %vm2603, %v2555, %v2651
        %v2700 = vsel %vm2604, %v2556, %v2652
        %v2701 = vsel %vm2605, %v2557, %v2653
        %v2702 = vsel %vm2606, %v2558, %v2654
        %v2703 = vsel %vm2607, %v2559, %v2655
        %v2704 = vsel %vm2608, %v2560, %v2656
        %v2705 = vsel %vm2609, %v2561, %v2657
        %v2706 = vsel %vm2610, %v2562, %v2658
        %v2707 = vsel %vm2611, %v2563, %v2659
        %v2708 = vsel %vm2612, %v2564, %v2660
        %v2709 = vsel %vm2613, %v2565, %v2661
        %v2710 = vsel %vm2614, %v2566, %v2662
        %v2711 = vsel %vm2615, %v2567, %v2663
        %v2712 = vsel %vm2616, %v2568, %v2664
        %v2713 = vsel %vm2617, %v2569, %v2665
        %v2714 = vsel %vm2618, %v2570, %v2666
        %v2715 = vsel %vm2619, %v2571, %v2667
        %v2716 = vsel %vm2620, %v2572, %v2668
        %v2717 = vsel %vm2621, %v2573, %v2669
        %v2718 = vsel %vm2622, %v2574, %v2670
        %v2719 = vsel %vm2623, %v2575, %v2671
        %v2720 = vsel %vm2624, %v2576, %v2672
        %v2721 = vsel %vm2625, %v2577, %v2673
        %v2722 = vsel %vm2626, %v2578, %v2674
        %v2723 = vsel %vm2627, %v2579, %v2675
        %v2724 = vsel %vm2628, %v2580, %v2676
        %v2725 = vsel %vm2629, %v2581, %v2677
        %v2726 = vsel %vm2630, %v2582, %v2678
        %v2727 = vsel %vm2631, %v2583, %v2679
        %v2728 = vsel %vm2632, %v2584, %v2680
        %v2729 = vsel %vm2633, %v2585, %v2681
        %v2730 = vsel %vm2634, %v2586, %v2682
        %v2731 = vsel %vm2635, %v2587, %v2683
        %v2732 = vsel %vm2636, %v2588, %v2684
        %v2733 = vsel %vm2637, %v2589, %v2685
        %v2734 = vsel %vm2638, %v2590, %v2686
        %v2735 = vsel %vm2639, %v2591, %v2687
        %v2736 = vsel %vm2640, %v2592, %v2688
        %v2737 = vsel %vm2641, %v2593, %v2689
        %v2738 = vsel %vm2642, %v2594, %v2690
        %v2739 = vsel %vm2643, %v2595, %v2691
        %v2740 = vsel %vm2644, %v2596, %v2692
        %v2741 = vsel %vm2645, %v2597, %v2693
        %v2742 = vsel %vm2646, %v2598, %v2694
        %v2743 = vpack.c.bf16 %v2696, %v2695
        %v2744 = vpack.c.bf16 %v2698, %v2697
        %v2745 = vpack.c.bf16 %v2700, %v2699
        %v2746 = vpack.c.bf16 %v2702, %v2701
        %v2747 = vpack.c.bf16 %v2704, %v2703
        %v2748 = vpack.c.bf16 %v2706, %v2705
        %v2749 = vpack.c.bf16 %v2708, %v2707
        %v2750 = vpack.c.bf16 %v2710, %v2709
        %v2751 = vpack.c.bf16 %v2712, %v2711
        %v2752 = vpack.c.bf16 %v2714, %v2713
        %v2753 = vpack.c.bf16 %v2716, %v2715
        %v2754 = vpack.c.bf16 %v2718, %v2717
        %v2755 = vpack.c.bf16 %v2720, %v2719
        %v2756 = vpack.c.bf16 %v2722, %v2721
        %v2757 = vpack.c.bf16 %v2724, %v2723
        %v2758 = vpack.c.bf16 %v2726, %v2725
        %v2759 = vpack.c.bf16 %v2728, %v2727
        %v2760 = vpack.c.bf16 %v2730, %v2729
        %v2761 = vpack.c.bf16 %v2732, %v2731
        %v2762 = vpack.c.bf16 %v2734, %v2733
        %v2763 = vpack.c.bf16 %v2736, %v2735
        %v2764 = vpack.c.bf16 %v2738, %v2737
        %v2765 = vpack.c.bf16 %v2740, %v2739
        %v2766 = vpack.c.bf16 %v2742, %v2741
        %v2767 = vld [vmem:[%s4] sm:$0xf]
        %v2768 = vld [vmem:[%s5] sm:$0x1]
        %v2770 = vperm.slane %v2768, 0
        %vm2772 = vcmask 64512
        %v2774 = vsel %vm2772, %v2743, 0
        %v2777 = vsel %vm2772, %v2744, 0
        %v2780 = vsel %vm2772, %v2745, 0
        %v2783 = vsel %vm2772, %v2746, 0
        %v2786 = vsel %vm2772, %v2747, 0
        %v2789 = vsel %vm2772, %v2748, 0
        %v2792 = vsel %vm2772, %v2749, 0
        %v2795 = vsel %vm2772, %v2750, 0
        %v2798 = vsel %vm2772, %v2751, 0
        %v2801 = vsel %vm2772, %v2752, 0
        %v2804 = vsel %vm2772, %v2753, 0
        %v2807 = vsel %vm2772, %v2754, 0
        %v2810 = vsel %vm2772, %v2755, 0
        %v2813 = vsel %vm2772, %v2756, 0
        %v2816 = vsel %vm2772, %v2757, 0
        %v2819 = vsel %vm2772, %v2758, 0
        %v2822 = vsel %vm2772, %v2759, 0
        %v2825 = vsel %vm2772, %v2760, 0
        %v2828 = vsel %vm2772, %v2761, 0
        %v2831 = vsel %vm2772, %v2762, 0
        %v2834 = vsel %vm2772, %v2763, 0
        %v2837 = vsel %vm2772, %v2764, 0
        %v2840 = vsel %vm2772, %v2765, 0
        %v2843 = vsel %vm2772, %v2766, 0
        %vm2845 = vcmask 1043456
        %v2847 = vsel %vm2845, %v2767, 0
        %2849 = vmatpush.bf16.msra.mxu0 0
        %2850 = vmatpush.bf16.msra.mxu0 0
        %2851 = vmatpush.bf16.msra.mxu0 0
        %2852 = vmatpush.bf16.msra.mxu0 0
        %2853 = vmatpush.bf16.msra.mxu0 0
        %2854 = vmatpush.bf16.msra.mxu0 0
        %2855 = vmatpush.bf16.msra.mxu0 0
        %2856 = vmatpush.bf16.msra.mxu0 %v2847
        %2857 = vmatmul.bf16.gmra.mxu0 %v2774
        %v2858 = vpop.f32.mrf.mxu0
        %v2859 = vadd.f32 %v2770, %v2858
        %v2860 = vpop.f32.mrf.mxu0
        %v2861 = vadd.f32 %v2770, %v2860
        %2862 = vmatmul.bf16.gmra.mxu0 %v2777
        %v2863 = vpop.f32.mrf.mxu0
        %v2864 = vadd.f32 %v2770, %v2863
        %v2865 = vpop.f32.mrf.mxu0
        %v2866 = vadd.f32 %v2770, %v2865
        %2867 = vmatmul.bf16.gmra.mxu0 %v2780
        %v2868 = vpop.f32.mrf.mxu0
        %v2869 = vadd.f32 %v2770, %v2868
        %v2870 = vpop.f32.mrf.mxu0
        %v2871 = vadd.f32 %v2770, %v2870
        %2872 = vmatmul.bf16.gmra.mxu0 %v2783
        %v2873 = vpop.f32.mrf.mxu0
        %v2874 = vadd.f32 %v2770, %v2873
        %v2875 = vpop.f32.mrf.mxu0
        %v2876 = vadd.f32 %v2770, %v2875
        %2877 = vmatmul.bf16.gmra.mxu0 %v2786
        %v2878 = vpop.f32.mrf.mxu0
        %v2879 = vadd.f32 %v2770, %v2878
        %v2880 = vpop.f32.mrf.mxu0
        %v2881 = vadd.f32 %v2770, %v2880
        %2882 = vmatmul.bf16.gmra.mxu0 %v2789
        %v2883 = vpop.f32.mrf.mxu0
        %v2884 = vadd.f32 %v2770, %v2883
        %v2885 = vpop.f32.mrf.mxu0
        %v2886 = vadd.f32 %v2770, %v2885
        %2887 = vmatmul.bf16.gmra.mxu0 %v2792
        %v2888 = vpop.f32.mrf.mxu0
        %v2889 = vadd.f32 %v2770, %v2888
        %v2890 = vpop.f32.mrf.mxu0
        %v2891 = vadd.f32 %v2770, %v2890
        %2892 = vmatmul.bf16.gmra.mxu0 %v2795
        %v2893 = vpop.f32.mrf.mxu0
        %v2894 = vadd.f32 %v2770, %v2893
        %v2895 = vpop.f32.mrf.mxu0
        %v2896 = vadd.f32 %v2770, %v2895
        %2897 = vmatmul.bf16.gmra.mxu0 %v2798
        %v2898 = vpop.f32.mrf.mxu0
        %v2899 = vadd.f32 %v2770, %v2898
        %v2900 = vpop.f32.mrf.mxu0
        %v2901 = vadd.f32 %v2770, %v2900
        %2902 = vmatmul.bf16.gmra.mxu0 %v2801
        %v2903 = vpop.f32.mrf.mxu0
        %v2904 = vadd.f32 %v2770, %v2903
        %v2905 = vpop.f32.mrf.mxu0
        %v2906 = vadd.f32 %v2770, %v2905
        %2907 = vmatmul.bf16.gmra.mxu0 %v2804
        %v2908 = vpop.f32.mrf.mxu0
        %v2909 = vadd.f32 %v2770, %v2908
        %v2910 = vpop.f32.mrf.mxu0
        %v2911 = vadd.f32 %v2770, %v2910
        %2912 = vmatmul.bf16.gmra.mxu0 %v2807
        %v2913 = vpop.f32.mrf.mxu0
        %v2914 = vadd.f32 %v2770, %v2913
        %v2915 = vpop.f32.mrf.mxu0
        %v2916 = vadd.f32 %v2770, %v2915
        %2917 = vmatmul.bf16.gmra.mxu0 %v2810
        %v2918 = vpop.f32.mrf.mxu0
        %v2919 = vadd.f32 %v2770, %v2918
        %v2920 = vpop.f32.mrf.mxu0
        %v2921 = vadd.f32 %v2770, %v2920
        %2922 = vmatmul.bf16.gmra.mxu0 %v2813
        %v2923 = vpop.f32.mrf.mxu0
        %v2924 = vadd.f32 %v2770, %v2923
        %v2925 = vpop.f32.mrf.mxu0
        %v2926 = vadd.f32 %v2770, %v2925
        %2927 = vmatmul.bf16.gmra.mxu0 %v2816
        %v2928 = vpop.f32.mrf.mxu0
        %v2929 = vadd.f32 %v2770, %v2928
        %v2930 = vpop.f32.mrf.mxu0
        %v2931 = vadd.f32 %v2770, %v2930
        %2932 = vmatmul.bf16.gmra.mxu0 %v2819
        %v2933 = vpop.f32.mrf.mxu0
        %v2934 = vadd.f32 %v2770, %v2933
        %v2935 = vpop.f32.mrf.mxu0
        %v2936 = vadd.f32 %v2770, %v2935
        %2937 = vmatmul.bf16.gmra.mxu0 %v2822
        %v2938 = vpop.f32.mrf.mxu0
        %v2939 = vadd.f32 %v2770, %v2938
        %v2940 = vpop.f32.mrf.mxu0
        %v2941 = vadd.f32 %v2770, %v2940
        %2942 = vmatmul.bf16.gmra.mxu0 %v2825
        %v2943 = vpop.f32.mrf.mxu0
        %v2944 = vadd.f32 %v2770, %v2943
        %v2945 = vpop.f32.mrf.mxu0
        %v2946 = vadd.f32 %v2770, %v2945
        %2947 = vmatmul.bf16.gmra.mxu0 %v2828
        %v2948 = vpop.f32.mrf.mxu0
        %v2949 = vadd.f32 %v2770, %v2948
        %v2950 = vpop.f32.mrf.mxu0
        %v2951 = vadd.f32 %v2770, %v2950
        %2952 = vmatmul.bf16.gmra.mxu0 %v2831
        %v2953 = vpop.f32.mrf.mxu0
        %v2954 = vadd.f32 %v2770, %v2953
        %v2955 = vpop.f32.mrf.mxu0
        %v2956 = vadd.f32 %v2770, %v2955
        %2957 = vmatmul.bf16.gmra.mxu0 %v2834
        %v2958 = vpop.f32.mrf.mxu0
        %v2959 = vadd.f32 %v2770, %v2958
        %v2960 = vpop.f32.mrf.mxu0
        %v2961 = vadd.f32 %v2770, %v2960
        %2962 = vmatmul.bf16.gmra.mxu0 %v2837
        %v2963 = vpop.f32.mrf.mxu0
        %v2964 = vadd.f32 %v2770, %v2963
        %v2965 = vpop.f32.mrf.mxu0
        %v2966 = vadd.f32 %v2770, %v2965
        %2967 = vmatmul.bf16.gmra.mxu0 %v2840
        %v2968 = vpop.f32.mrf.mxu0
        %v2969 = vadd.f32 %v2770, %v2968
        %v2970 = vpop.f32.mrf.mxu0
        %v2971 = vadd.f32 %v2770, %v2970
        %2972 = vmatmul.bf16.gmra.mxu0 %v2843
        %v2973 = vpop.f32.mrf.mxu0
        %v2974 = vadd.f32 %v2770, %v2973
        %v2975 = vpop.f32.mrf.mxu0
        %v2976 = vadd.f32 %v2770, %v2975
        %2977 = vdwg.mxu0
        %2978 = vst [vmem:[%s244] sm:$0xff] %v2859
        %2979 = vst [vmem:[%s244 + $0x8] sm:$0xff] %v2861
        %2980 = vst [vmem:[%s244 + $0x10] sm:$0xff] %v2864
        %2981 = vst [vmem:[%s244 + $0x18] sm:$0xff] %v2866
        %2982 = vst [vmem:[%s244 + $0x20] sm:$0xff] %v2869
        %2983 = vst [vmem:[%s244 + $0x28] sm:$0xff] %v2871
        %2984 = vst [vmem:[%s244 + $0x30] sm:$0xff] %v2874
        %2985 = vst [vmem:[%s244 + $0x38] sm:$0xff] %v2876
        %2986 = vst [vmem:[%s244 + $0x40] sm:$0xff] %v2879
        %2987 = vst [vmem:[%s244 + $0x48] sm:$0xff] %v2881
        %2988 = vst [vmem:[%s244 + $0x50] sm:$0xff] %v2884
        %2989 = vst [vmem:[%s244 + $0x58] sm:$0xff] %v2886
        %2990 = vst [vmem:[%s244 + $0x60] sm:$0xff] %v2889
        %2991 = vst [vmem:[%s244 + $0x68] sm:$0xff] %v2891
        %2992 = vst [vmem:[%s244 + $0x70] sm:$0xff] %v2894
        %2993 = vst [vmem:[%s244 + $0x78] sm:$0xff] %v2896
        %2994 = vst [vmem:[%s244 + $0x80] sm:$0xff] %v2899
        %2995 = vst [vmem:[%s244 + $0x88] sm:$0xff] %v2901
        %2996 = vst [vmem:[%s244 + $0x90] sm:$0xff] %v2904
        %2997 = vst [vmem:[%s244 + $0x98] sm:$0xff] %v2906
        %2998 = vst [vmem:[%s244 + $0xa0] sm:$0xff] %v2909
        %2999 = vst [vmem:[%s244 + $0xa8] sm:$0xff] %v2911
        %3000 = vst [vmem:[%s244 + $0xb0] sm:$0xff] %v2914
        %3001 = vst [vmem:[%s244 + $0xb8] sm:$0xff] %v2916
        %3002 = vst [vmem:[%s244 + $0xc0] sm:$0xff] %v2919
        %3003 = vst [vmem:[%s244 + $0xc8] sm:$0xff] %v2921
        %3004 = vst [vmem:[%s244 + $0xd0] sm:$0xff] %v2924
        %3005 = vst [vmem:[%s244 + $0xd8] sm:$0xff] %v2926
        %3006 = vst [vmem:[%s244 + $0xe0] sm:$0xff] %v2929
        %3007 = vst [vmem:[%s244 + $0xe8] sm:$0xff] %v2931
        %3008 = vst [vmem:[%s244 + $0xf0] sm:$0xff] %v2934
        %3009 = vst [vmem:[%s244 + $0xf8] sm:$0xff] %v2936
        %3010 = vst [vmem:[%s244 + $0x100] sm:$0xff] %v2939
        %3011 = vst [vmem:[%s244 + $0x108] sm:$0xff] %v2941
        %3012 = vst [vmem:[%s244 + $0x110] sm:$0xff] %v2944
        %3013 = vst [vmem:[%s244 + $0x118] sm:$0xff] %v2946
        %3014 = vst [vmem:[%s244 + $0x120] sm:$0xff] %v2949
        %3015 = vst [vmem:[%s244 + $0x128] sm:$0xff] %v2951
        %3016 = vst [vmem:[%s244 + $0x130] sm:$0xff] %v2954
        %3017 = vst [vmem:[%s244 + $0x138] sm:$0xff] %v2956
        %3018 = vst [vmem:[%s244 + $0x140] sm:$0xff] %v2959
        %3019 = vst [vmem:[%s244 + $0x148] sm:$0xff] %v2961
        %3020 = vst [vmem:[%s244 + $0x150] sm:$0xff] %v2964
        %3021 = vst [vmem:[%s244 + $0x158] sm:$0xff] %v2966
        %3022 = vst [vmem:[%s244 + $0x160] sm:$0xff] %v2969
        %3023 = vst [vmem:[%s244 + $0x168] sm:$0xff] %v2971
        %3024 = vst [vmem:[%s244 + $0x170] sm:$0xff] %v2974
        %3025 = vst [vmem:[%s244 + $0x178] sm:$0xff] %v2976
        %s3026 = sand.u32 %s159, 1
        %s3027 = scalar_lea.sflag [#allocation4], %s3026
        %s3028 = sand.u32 %s159, 1
        %s3029 = smul.addr %s3028, 384
        %s3030 = scalar_lea.vmem [#allocation3], %s3029
        // Predicated region
        $region45: #{tpu_custom_call.1} parent=43 // pred_check
          %p3031 = pneg %p169
        $region46: #{tpu_custom_call.1} parent=43 // pred_check_branch
          %3033 = sbr.rel (%p3031) target = $region48
        $region47: #{tpu_custom_call.1} parent=43 // pred_region
          %3035 = vsyncadd %s3027, 0
          %s3036 = smul.addr %s20, 48
          %s3037 = smul.addr %s3036, 8
          %s3038 = scalar_lea.hbm %s6, %s3037
          %s3039 = sshll.u32 %s3030, 4
          %s3040 = int_to_ptr.vmem [resolvable:$true] %s3039
          %s3041 = sshll.u32 %s3038, 4
          %s3042 = int_to_ptr.hbm [resolvable:$true] %s3041
          %3047 = dma.vmem_to_hbm [thread:$0]  %s3040, 6144, %s3042, %s3027, 128, 128, 8
        $region48: #{tpu_custom_call.1} parent=43 // pred_fallthru
          _
      $region44: #{tpu_custom_call.1} parent=5 // pred_fallthru
        _
      %p3048 = scmp.le.s32.totalorder 2, %s15
      // Predicated region
      $region49: #{tpu_custom_call.1} parent=5 // pred_check
        %p3049 = pneg %p3048
      $region50: #{tpu_custom_call.1} parent=5 // pred_check_branch
        %3051 = sbr.rel (%p3049) target = $region52
      $region51: #{tpu_custom_call.1} parent=5 // pred_region
        %s3052 = ssub.s32 %s15, 2
        // Predicated region
        $region53: #{tpu_custom_call.1} parent=51 // pred_check
          %p3053 = pneg %p175
        $region54: #{tpu_custom_call.1} parent=51 // pred_check_branch
          %3055 = sbr.rel (%p3053) target = $region56
        $region55: #{tpu_custom_call.1} parent=51 // pred_region
          %s3056 = sand.u32 %s160, 1
          %s3057 = scalar_lea.sflag [#allocation4], %s3056
          %s3058 = sand.u32 %s160, 1
          %s3059 = smul.addr %s3058, 384
          %s3060 = scalar_lea.vmem [#allocation3], %s3059
          %3062 = dma.done %s3057, 6144
        $region56: #{tpu_custom_call.1} parent=51 // pred_fallthru
          _
      $region52: #{tpu_custom_call.1} parent=5 // pred_fallthru
        _
    $region6: #{tpu_custom_call.1} parent=1 // loop_footer
      %s19 = sadd.s32 1, %s15
    $region7: #{tpu_custom_call.1} parent=1 // loop_footer_branch
      %14 = sbr.rel target = $region3
    $region8: #{tpu_custom_call.1} parent=1 // loop_exit
      _
    %3063 = vsyncpa [#allocation4], 1
    %s3064 = scalar_lea.sflag [#allocation4], 1
    %3065 = vsyncpa %s3064, 1

</llo_original>
